<compile_context>
chip_gen: v6e
topology: v6e:2x2x1
jax: 0.10.0
libtpu: 0.0.40
codegen_flags: <defaults>
</compile_context>

<pallas_src>
import functools

import jax
import jax.numpy as jnp
from jax.experimental import pallas as pl
from jax.experimental.pallas import tpu as pltpu


# ----------------------------------------------------------------------------
# Pallas kernel: full stacked bidirectional GRU over the whole sequence.
# ----------------------------------------------------------------------------
def _stacked_bigru_kernel(x_ref, *refs, num_layers, L, n_pad, H):
    w_refs = refs[:4 * num_layers]
    out_refs = refs[4 * num_layers:4 * num_layers + num_layers]
    gi_scr = refs[-1]

    H2 = 2 * H
    layer_in = x_ref[...]                        # (L*n_pad, D) bf16 (layer 0)

    for layer in range(num_layers):
        wih_ref, bih_ref, whh_ref, bhn_ref = w_refs[4 * layer:4 * (layer + 1)]
        out_ref = out_refs[layer]

        # ---- hoisted time-independent input matmul (one MXU op / layer) ----
        # wih_ref: (D, 6H) bf16, columns interleaved [r_f r_b z_f z_b n_f n_b]
        # bih_ref: (1, 6H) f32, contains b_ih + [b_hh_r, b_hh_z, 0] per dir.
        gi_scr[...] = (
            jnp.dot(layer_in.astype(jnp.bfloat16), wih_ref[...],
                    preferred_element_type=jnp.float32)
            + bih_ref[...])

        # loop-invariant loads / broadcasts, hoisted out of the recurrence
        whh = whh_ref[...]                                    # (2H, 6H) bf16
        bhn = jnp.broadcast_to(bhn_ref[...], (n_pad, H2))     # (n_pad, 2H) f32

        def step(t, h):
            base = pl.multiple_of(t * n_pad, n_pad)
            gi = gi_scr[pl.ds(base, n_pad), :]                # (n_pad, 6H)
            # ONE fused hidden-side matmul for BOTH directions (block-diag W)
            gh = jnp.dot(h.astype(jnp.bfloat16), whh,
                         preferred_element_type=jnp.float32)  # (n_pad, 6H)
            r = jax.nn.sigmoid(gi[:, :H2] + gh[:, :H2])
            z = jax.nn.sigmoid(gi[:, H2:2 * H2] + gh[:, H2:2 * H2])
            n = jnp.tanh(gi[:, 2 * H2:] + r * (gh[:, 2 * H2:] + bhn))
            h_new = (1.0 - z) * n + z * h                     # [h_f | h_b]
            out_ref[pl.ds(base, n_pad), :] = h_new            # = output row t
            return h_new

        h0 = jnp.zeros((n_pad, H2), jnp.float32)   # PyTorch hidden=None
        jax.lax.fori_loop(0, L, step, h0, unroll=min(L, 8))

        # layer l's output ([fwd | bwd] per step) feeds layer l+1 from VMEM
        layer_in = out_ref[...]


# ----------------------------------------------------------------------------
# Weight packing for the direction-fused layout
# ----------------------------------------------------------------------------
def _split_gates(a, H):
    return a[:H], a[H:2 * H], a[2 * H:]


def _prep_layer(p_fwd, p_bwd, H):
    """Pack one layer's fwd+bwd params; column order [r_f r_b z_f z_b n_f n_b]."""
    irf, izf, in_f = _split_gates(p_fwd["w_ih"], H)           # each (H, D)
    irb, izb, in_b = _split_gates(p_bwd["w_ih"], H)
    wih = jnp.concatenate([irf, irb, izf, izb, in_f, in_b], axis=0).T  # (D, 6H)

    hrf, hzf, hnf = _split_gates(p_fwd["w_hh"], H)            # each (H, H)
    hrb, hzb, hnb = _split_gates(p_bwd["w_hh"], H)
    zeros = jnp.zeros((H, H), jnp.float32)
    # rows 0:H multiply h_f, rows H:2H multiply h_b  -> block-diagonal (2H, 6H)
    whh = jnp.concatenate([
        jnp.concatenate([hrf.T, zeros, hzf.T, zeros, hnf.T, zeros], axis=1),
        jnp.concatenate([zeros, hrb.T, zeros, hzb.T, zeros, hnb.T], axis=1),
    ], axis=0)

    birf, bizf, binf = _split_gates(p_fwd["b_ih"], H)
    birb, bizb, binb = _split_gates(p_bwd["b_ih"], H)
    bhrf, bhzf, bhnf = _split_gates(p_fwd["b_hh"], H)
    bhrb, bhzb, bhnb = _split_gates(p_bwd["b_hh"], H)
    # b_ih (all gates) + the r/z parts of b_hh are folded into Gi; the n-gate
    # hidden bias must stay inside r * (gh_n + b_hn).
    bih = jnp.concatenate([birf + bhrf, birb + bhrb,
                           bizf + bhzf, bizb + bhzb,
                           binf, binb]).reshape(1, 6 * H)
    bhn = jnp.concatenate([bhnf, bhnb]).reshape(1, 2 * H)

    return (wih.astype(jnp.bfloat16), bih, whh.astype(jnp.bfloat16), bhn)


# ----------------------------------------------------------------------------
# Wrapper: single pallas_call for the whole stacked bidirectional GRU
# ----------------------------------------------------------------------------
def stacked_bigru(x_seq, gru_params, num_layers, H):
    """x_seq: (L, n_pad, D) f32, batch padded to a multiple of 8.

    Returns a tuple of num_layers arrays of shape (L*n_pad, 2H);
    columns [:H] = fwd hidden, [H:] = bwd hidden at each timestep.
    """
    L, n_pad, D = x_seq.shape
    x2d = x_seq.reshape(L * n_pad, D).astype(jnp.bfloat16)   # MXU LHS only

    flat_weights = []
    for layer in range(num_layers):
        flat_weights.extend(
            _prep_layer(gru_params[(layer, 0)], gru_params[(layer, 1)], H))

    kernel = functools.partial(_stacked_bigru_kernel,
                               num_layers=num_layers, L=L, n_pad=n_pad, H=H)
    vmem = pltpu.MemorySpace.VMEM
    return pl.pallas_call(
        kernel,
        out_shape=tuple(
            jax.ShapeDtypeStruct((L * n_pad, 2 * H), jnp.float32)
            for _ in range(num_layers)),
        # grid-less: whole arrays resident in VMEM, no pipeline double-buffers
        in_specs=[pl.BlockSpec(memory_space=vmem)] * (1 + 4 * num_layers),
        out_specs=tuple(pl.BlockSpec(memory_space=vmem)
                        for _ in range(num_layers)),
        scratch_shapes=[pltpu.VMEM((L * n_pad, 6 * H), jnp.float32)],
        compiler_params=pltpu.CompilerParams(
            vmem_limit_bytes=48 * 1024 * 1024),
    )(x2d, *flat_weights)
    # TODO(synk): for long sequences / large H, chunk the time axis (grid over
    # L-chunks with the h carry in scratch) instead of whole-sequence-in-VMEM.


# ----------------------------------------------------------------------------
# Parameter initialization (deterministic, PyTorch-like shapes)
# ----------------------------------------------------------------------------
def init_params(key, vocab_size, num_layers, input_size, hidden_size):
    params = {}
    key, k_emb = jax.random.split(key)
    params["embedding"] = jax.random.normal(
        k_emb, (vocab_size, input_size), dtype=jnp.float32)

    k = 1.0 / jnp.sqrt(hidden_size)
    gru = {}
    for layer in range(num_layers):
        in_dim = input_size if layer == 0 else 2 * hidden_size
        for direction in range(2):
            key, k1, k2, k3, k4 = jax.random.split(key, 5)
            gru[(layer, direction)] = dict(
                w_ih=jax.random.uniform(k1, (3 * hidden_size, in_dim),
                                        minval=-k, maxval=k, dtype=jnp.float32),
                w_hh=jax.random.uniform(k2, (3 * hidden_size, hidden_size),
                                        minval=-k, maxval=k, dtype=jnp.float32),
                b_ih=jax.random.uniform(k3, (3 * hidden_size,),
                                        minval=-k, maxval=k, dtype=jnp.float32),
                b_hh=jax.random.uniform(k4, (3 * hidden_size,),
                                        minval=-k, maxval=k, dtype=jnp.float32),
            )
    params["gru"] = gru
    return params


# ----------------------------------------------------------------------------
# Forward pass (embedding gather + glue in JAX, whole recurrence in Pallas)
# ----------------------------------------------------------------------------
def encoder_birnn_forward(params, x_idx, num_layers):
    N, L = x_idx.shape
    H = params["gru"][(0, 0)]["w_hh"].shape[1]

    emb = params["embedding"][x_idx]                 # (N, L, D)  gather
    x_seq = jnp.transpose(emb, (1, 0, 2))            # (L, N, D)  time-major

    # pad batch (sublane) dim to a multiple of 8; padded rows are independent
    n_pad = max(8, ((N + 7) // 8) * 8)
    if n_pad != N:
        x_seq = jnp.pad(x_seq, ((0, 0), (0, n_pad - N), (0, 0)))

    outs = stacked_bigru(x_seq, params["gru"], num_layers, H)
    outs = [o.reshape(L, n_pad, 2 * H) for o in outs]

    all_hidden = []                                  # ordering l0f,l0b,l1f,l1b
    for layer in range(num_layers):
        all_hidden.append(outs[layer][:, :N, :H])    # fwd hidden per step
        all_hidden.append(outs[layer][:, :N, H:])    # bwd hidden per step

    outputs = jnp.transpose(outs[-1][:, :N, :], (1, 0, 2))   # (N, L, 2H)
    hiddens = jnp.stack(all_hidden, axis=1)          # (L, 2*num_layers, N, H)
    return outputs, hiddens


# ----------------------------------------------------------------------------
# Pure-JAX f32 reference (for correctness check)
# ----------------------------------------------------------------------------
def _gru_cell_ref(x, h, w_ih, w_hh, b_ih, b_hh):
    H = h.shape[-1]
    gi = x @ w_ih.T + b_ih
    gh = h @ w_hh.T + b_hh
    r = jax.nn.sigmoid(gi[:, :H] + gh[:, :H])
    z = jax.nn.sigmoid(gi[:, H:2 * H] + gh[:, H:2 * H])
    n = jnp.tanh(gi[:, 2 * H:] + r * gh[:, 2 * H:])
    return (1.0 - z) * n + z * h


def encoder_birnn_ref(params, x_idx, num_layers, hidden_size):
    emb = params["embedding"][x_idx]
    layer_input = jnp.transpose(emb, (1, 0, 2))
    L, N, _ = layer_input.shape
    all_hidden = []
    for layer in range(num_layers):
        dir_outs = []
        for direction in range(2):
            p = params["gru"][(layer, direction)]
            h = jnp.zeros((N, hidden_size), jnp.float32)
            hs = []
            for t in range(L):
                h = _gru_cell_ref(layer_input[t], h, p["w_ih"], p["w_hh"],
                                  p["b_ih"], p["b_hh"])
                hs.append(h)
            h_seq = jnp.stack(hs, axis=0)
            dir_outs.append(h_seq)
            all_hidden.append(h_seq)
        layer_input = jnp.concatenate(dir_outs, axis=-1)
    return jnp.transpose(layer_input, (1, 0, 2)), jnp.stack(all_hidden, axis=1)


if __name__ == "__main__":
    vocab_size, num_layers, input_size, hidden_size = 50, 2, 16, 32
    N, max_L = 2, 8

    key = jax.random.PRNGKey(0)
    key, k_params, k_x = jax.random.split(key, 3)
    params = init_params(k_params, vocab_size, num_layers, input_size,
                         hidden_size)
    x = jax.random.randint(k_x, (N, max_L), 0, vocab_size, dtype=jnp.int32)

    fwd = jax.jit(functools.partial(encoder_birnn_forward,
                                    num_layers=num_layers))
    outputs, hiddens = fwd(params, x)
    jax.block_until_ready((outputs, hiddens))

    assert outputs.shape == (N, max_L, 2 * hidden_size), outputs.shape
    assert hiddens.shape == (max_L, num_layers * 2, N, hidden_size), hiddens.shape

    out_ref, hid_ref = encoder_birnn_ref(params, x, num_layers, hidden_size)
    # bf16 MXU operands (f32 accumulation / f32 gate math) vs f32 reference.
    assert jnp.allclose(outputs, out_ref, atol=3e-2, rtol=3e-2), \
        float(jnp.max(jnp.abs(outputs - out_ref)))
    assert jnp.allclose(hiddens, hid_ref, atol=3e-2, rtol=3e-2), \
        float(jnp.max(jnp.abs(hiddens - hid_ref)))

    print("KERNEL_OK")
</pallas_src>

<mosaic_0001>
module attributes {stable_mosaic.version = 11 : i64} {
  func.func @_stacked_bigru_kernel(%arg0: memref<64x16xbf16, #tpu.memory_space<vmem>>, %arg1: memref<16x192xbf16, #tpu.memory_space<vmem>>, %arg2: memref<1x192xf32, #tpu.memory_space<vmem>>, %arg3: memref<64x192xbf16, #tpu.memory_space<vmem>>, %arg4: memref<1x64xf32, #tpu.memory_space<vmem>>, %arg5: memref<64x192xbf16, #tpu.memory_space<vmem>>, %arg6: memref<1x192xf32, #tpu.memory_space<vmem>>, %arg7: memref<64x192xbf16, #tpu.memory_space<vmem>>, %arg8: memref<1x64xf32, #tpu.memory_space<vmem>>, %arg9: memref<64x64xf32, #tpu.memory_space<vmem>>, %arg10: memref<64x64xf32, #tpu.memory_space<vmem>>, %arg11: memref<64x192xf32, #tpu.memory_space<vmem>>) attributes {dimension_semantics = [], scalar_prefetch = 0 : i64, scratch_operands = 1 : i64, tpu.core_type = #tpu.core_type<tc>} {
    %c0 = arith.constant 0 : index
    %c0_0 = arith.constant 0 : index
    %0 = vector.load %arg0[%c0, %c0_0] : memref<64x16xbf16, #tpu.memory_space<vmem>>, vector<64x16xbf16>
    %c0_1 = arith.constant 0 : index
    %c0_2 = arith.constant 0 : index
    %1 = vector.load %arg1[%c0_1, %c0_2] : memref<16x192xbf16, #tpu.memory_space<vmem>>, vector<16x192xbf16>
    %cst = arith.constant dense<0.000000e+00> : vector<64x192xf32>
    %2 = tpu.matmul %0, %1, %cst {dimension_numbers = #tpu.dot_dimension_numbers<[1], [0], [0], [1], [0, 0, 1, 1], [], []>} : vector<64x16xbf16>, vector<16x192xbf16>, vector<64x192xf32> -> vector<64x192xf32>
    %c0_3 = arith.constant 0 : index
    %c0_4 = arith.constant 0 : index
    %3 = vector.load %arg2[%c0_3, %c0_4] : memref<1x192xf32, #tpu.memory_space<vmem>>, vector<1x192xf32>
    %4 = vector.broadcast %3 : vector<1x192xf32> to vector<64x192xf32>
    %5 = arith.addf %2, %4 : vector<64x192xf32>
    %c0_5 = arith.constant 0 : index
    %c0_6 = arith.constant 0 : index
    %6 = vector.load %arg11[%c0_5, %c0_6] : memref<64x192xf32, #tpu.memory_space<vmem>>, vector<64x192xf32>
    tpu.vector_store %arg11[%c0_5, %c0_6], %5 {strides = array<i32>} : memref<64x192xf32, #tpu.memory_space<vmem>>, vector<64x192xf32>,
    %c0_7 = arith.constant 0 : index
    %c0_8 = arith.constant 0 : index
    %7 = vector.load %arg3[%c0_7, %c0_8] : memref<64x192xbf16, #tpu.memory_space<vmem>>, vector<64x192xbf16>
    %c0_9 = arith.constant 0 : index
    %c0_10 = arith.constant 0 : index
    %8 = vector.load %arg4[%c0_9, %c0_10] : memref<1x64xf32, #tpu.memory_space<vmem>>, vector<1x64xf32>
    %9 = vector.shape_cast %8 : vector<1x64xf32> to vector<1x64xf32>
    %10 = vector.broadcast %9 : vector<1x64xf32> to vector<8x64xf32>
    %cst_11 = arith.constant 0.000000e+00 : f32
    %11 = vector.broadcast %cst_11 : f32 to vector<8x64xf32>
    %c0_i32 = arith.constant 0 : i32
    %c8_i32 = arith.constant 8 : i32
    %12 = arith.muli %c0_i32, %c8_i32 : i32
    %13 = tpu.assume_multiple %12, 8 : i32
    %14 = arith.index_cast %13 : i32 to index
    %c0_12 = arith.constant 0 : index
    %15 = vector.load %arg11[%14, %c0_12] : memref<64x192xf32, #tpu.memory_space<vmem>>, vector<8x192xf32>
    %16 = arith.truncf %11 : vector<8x64xf32> to vector<8x64xbf16>
    %cst_13 = arith.constant dense<0.000000e+00> : vector<8x192xf32>
    %17 = tpu.matmul %16, %7, %cst_13 {dimension_numbers = #tpu.dot_dimension_numbers<[1], [0], [0], [1], [0, 0, 1, 1], [], []>} : vector<8x64xbf16>, vector<64x192xbf16>, vector<8x192xf32> -> vector<8x192xf32>
    %18 = vector.extract_strided_slice %15 {offsets = [0, 0], sizes = [8, 64], strides = [1, 1]} : vector<8x192xf32> to vector<8x64xf32>
    %19 = vector.extract_strided_slice %17 {offsets = [0, 0], sizes = [8, 64], strides = [1, 1]} : vector<8x192xf32> to vector<8x64xf32>
    %20 = arith.addf %18, %19 : vector<8x64xf32>
    %21 = arith.negf %20 : vector<8x64xf32>
    %22 = math.exp %21 : vector<8x64xf32>
    %cst_14 = arith.constant 1.000000e+00 : f32
    %23 = vector.broadcast %cst_14 : f32 to vector<8x64xf32>
    %24 = arith.addf %23, %22 : vector<8x64xf32>
    %25 = arith.divf %23, %24 : vector<8x64xf32>
    %26 = vector.extract_strided_slice %15 {offsets = [0, 64], sizes = [8, 64], strides = [1, 1]} : vector<8x192xf32> to vector<8x64xf32>
    %27 = vector.extract_strided_slice %17 {offsets = [0, 64], sizes = [8, 64], strides = [1, 1]} : vector<8x192xf32> to vector<8x64xf32>
    %28 = arith.addf %26, %27 : vector<8x64xf32>
    %29 = arith.negf %28 : vector<8x64xf32>
    %30 = math.exp %29 : vector<8x64xf32>
    %cst_15 = arith.constant 1.000000e+00 : f32
    %31 = vector.broadcast %cst_15 : f32 to vector<8x64xf32>
    %32 = arith.addf %31, %30 : vector<8x64xf32>
    %33 = arith.divf %31, %32 : vector<8x64xf32>
    %34 = vector.extract_strided_slice %15 {offsets = [0, 128], sizes = [8, 64], strides = [1, 1]} : vector<8x192xf32> to vector<8x64xf32>
    %35 = vector.extract_strided_slice %17 {offsets = [0, 128], sizes = [8, 64], strides = [1, 1]} : vector<8x192xf32> to vector<8x64xf32>
    %36 = arith.addf %35, %10 : vector<8x64xf32>
    %37 = arith.mulf %25, %36 : vector<8x64xf32>
    %38 = arith.addf %34, %37 : vector<8x64xf32>
    %39 = math.tanh %38 : vector<8x64xf32>
    %cst_16 = arith.constant 1.000000e+00 : f32
    %40 = vector.broadcast %cst_16 : f32 to vector<8x64xf32>
    %41 = arith.subf %40, %33 : vector<8x64xf32>
    %42 = arith.mulf %41, %39 : vector<8x64xf32>
    %43 = arith.mulf %33, %11 : vector<8x64xf32>
    %44 = arith.addf %42, %43 : vector<8x64xf32>
    %45 = arith.index_cast %13 : i32 to index
    %c0_17 = arith.constant 0 : index
    %46 = vector.load %arg9[%45, %c0_17] : memref<64x64xf32, #tpu.memory_space<vmem>>, vector<8x64xf32>
    tpu.vector_store %arg9[%45, %c0_17], %44 {strides = array<i32>} : memref<64x64xf32, #tpu.memory_space<vmem>>, vector<8x64xf32>,
    %c1_i32 = arith.constant 1 : i32
    %c8_i32_18 = arith.constant 8 : i32
    %47 = arith.muli %c1_i32, %c8_i32_18 : i32
    %48 = tpu.assume_multiple %47, 8 : i32
    %49 = arith.index_cast %48 : i32 to index
    %c0_19 = arith.constant 0 : index
    %50 = vector.load %arg11[%49, %c0_19] : memref<64x192xf32, #tpu.memory_space<vmem>>, vector<8x192xf32>
    %51 = arith.truncf %44 : vector<8x64xf32> to vector<8x64xbf16>
    %cst_20 = arith.constant dense<0.000000e+00> : vector<8x192xf32>
    %52 = tpu.matmul %51, %7, %cst_20 {dimension_numbers = #tpu.dot_dimension_numbers<[1], [0], [0], [1], [0, 0, 1, 1], [], []>} : vector<8x64xbf16>, vector<64x192xbf16>, vector<8x192xf32> -> vector<8x192xf32>
    %53 = vector.extract_strided_slice %50 {offsets = [0, 0], sizes = [8, 64], strides = [1, 1]} : vector<8x192xf32> to vector<8x64xf32>
    %54 = vector.extract_strided_slice %52 {offsets = [0, 0], sizes = [8, 64], strides = [1, 1]} : vector<8x192xf32> to vector<8x64xf32>
    %55 = arith.addf %53, %54 : vector<8x64xf32>
    %56 = arith.negf %55 : vector<8x64xf32>
    %57 = math.exp %56 : vector<8x64xf32>
    %cst_21 = arith.constant 1.000000e+00 : f32
    %58 = vector.broadcast %cst_21 : f32 to vector<8x64xf32>
    %59 = arith.addf %58, %57 : vector<8x64xf32>
    %60 = arith.divf %58, %59 : vector<8x64xf32>
    %61 = vector.extract_strided_slice %50 {offsets = [0, 64], sizes = [8, 64], strides = [1, 1]} : vector<8x192xf32> to vector<8x64xf32>
    %62 = vector.extract_strided_slice %52 {offsets = [0, 64], sizes = [8, 64], strides = [1, 1]} : vector<8x192xf32> to vector<8x64xf32>
    %63 = arith.addf %61, %62 : vector<8x64xf32>
    %64 = arith.negf %63 : vector<8x64xf32>
    %65 = math.exp %64 : vector<8x64xf32>
    %cst_22 = arith.constant 1.000000e+00 : f32
    %66 = vector.broadcast %cst_22 : f32 to vector<8x64xf32>
    %67 = arith.addf %66, %65 : vector<8x64xf32>
    %68 = arith.divf %66, %67 : vector<8x64xf32>
    %69 = vector.extract_strided_slice %50 {offsets = [0, 128], sizes = [8, 64], strides = [1, 1]} : vector<8x192xf32> to vector<8x64xf32>
    %70 = vector.extract_strided_slice %52 {offsets = [0, 128], sizes = [8, 64], strides = [1, 1]} : vector<8x192xf32> to vector<8x64xf32>
    %71 = arith.addf %70, %10 : vector<8x64xf32>
    %72 = arith.mulf %60, %71 : vector<8x64xf32>
    %73 = arith.addf %69, %72 : vector<8x64xf32>
    %74 = math.tanh %73 : vector<8x64xf32>
    %cst_23 = arith.constant 1.000000e+00 : f32
    %75 = vector.broadcast %cst_23 : f32 to vector<8x64xf32>
    %76 = arith.subf %75, %68 : vector<8x64xf32>
    %77 = arith.mulf %76, %74 : vector<8x64xf32>
    %78 = arith.mulf %68, %44 : vector<8x64xf32>
    %79 = arith.addf %77, %78 : vector<8x64xf32>
    %80 = arith.index_cast %48 : i32 to index
    %c0_24 = arith.constant 0 : index
    %81 = vector.load %arg9[%80, %c0_24] : memref<64x64xf32, #tpu.memory_space<vmem>>, vector<8x64xf32>
    tpu.vector_store %arg9[%80, %c0_24], %79 {strides = array<i32>} : memref<64x64xf32, #tpu.memory_space<vmem>>, vector<8x64xf32>,
    %c2_i32 = arith.constant 2 : i32
    %c8_i32_25 = arith.constant 8 : i32
    %82 = arith.muli %c2_i32, %c8_i32_25 : i32
    %83 = tpu.assume_multiple %82, 8 : i32
    %84 = arith.index_cast %83 : i32 to index
    %c0_26 = arith.constant 0 : index
    %85 = vector.load %arg11[%84, %c0_26] : memref<64x192xf32, #tpu.memory_space<vmem>>, vector<8x192xf32>
    %86 = arith.truncf %79 : vector<8x64xf32> to vector<8x64xbf16>
    %cst_27 = arith.constant dense<0.000000e+00> : vector<8x192xf32>
    %87 = tpu.matmul %86, %7, %cst_27 {dimension_numbers = #tpu.dot_dimension_numbers<[1], [0], [0], [1], [0, 0, 1, 1], [], []>} : vector<8x64xbf16>, vector<64x192xbf16>, vector<8x192xf32> -> vector<8x192xf32>
    %88 = vector.extract_strided_slice %85 {offsets = [0, 0], sizes = [8, 64], strides = [1, 1]} : vector<8x192xf32> to vector<8x64xf32>
    %89 = vector.extract_strided_slice %87 {offsets = [0, 0], sizes = [8, 64], strides = [1, 1]} : vector<8x192xf32> to vector<8x64xf32>
    %90 = arith.addf %88, %89 : vector<8x64xf32>
    %91 = arith.negf %90 : vector<8x64xf32>
    %92 = math.exp %91 : vector<8x64xf32>
    %cst_28 = arith.constant 1.000000e+00 : f32
    %93 = vector.broadcast %cst_28 : f32 to vector<8x64xf32>
    %94 = arith.addf %93, %92 : vector<8x64xf32>
    %95 = arith.divf %93, %94 : vector<8x64xf32>
    %96 = vector.extract_strided_slice %85 {offsets = [0, 64], sizes = [8, 64], strides = [1, 1]} : vector<8x192xf32> to vector<8x64xf32>
    %97 = vector.extract_strided_slice %87 {offsets = [0, 64], sizes = [8, 64], strides = [1, 1]} : vector<8x192xf32> to vector<8x64xf32>
    %98 = arith.addf %96, %97 : vector<8x64xf32>
    %99 = arith.negf %98 : vector<8x64xf32>
    %100 = math.exp %99 : vector<8x64xf32>
    %cst_29 = arith.constant 1.000000e+00 : f32
    %101 = vector.broadcast %cst_29 : f32 to vector<8x64xf32>
    %102 = arith.addf %101, %100 : vector<8x64xf32>
    %103 = arith.divf %101, %102 : vector<8x64xf32>
    %104 = vector.extract_strided_slice %85 {offsets = [0, 128], sizes = [8, 64], strides = [1, 1]} : vector<8x192xf32> to vector<8x64xf32>
    %105 = vector.extract_strided_slice %87 {offsets = [0, 128], sizes = [8, 64], strides = [1, 1]} : vector<8x192xf32> to vector<8x64xf32>
    %106 = arith.addf %105, %10 : vector<8x64xf32>
    %107 = arith.mulf %95, %106 : vector<8x64xf32>
    %108 = arith.addf %104, %107 : vector<8x64xf32>
    %109 = math.tanh %108 : vector<8x64xf32>
    %cst_30 = arith.constant 1.000000e+00 : f32
    %110 = vector.broadcast %cst_30 : f32 to vector<8x64xf32>
    %111 = arith.subf %110, %103 : vector<8x64xf32>
    %112 = arith.mulf %111, %109 : vector<8x64xf32>
    %113 = arith.mulf %103, %79 : vector<8x64xf32>
    %114 = arith.addf %112, %113 : vector<8x64xf32>
    %115 = arith.index_cast %83 : i32 to index
    %c0_31 = arith.constant 0 : index
    %116 = vector.load %arg9[%115, %c0_31] : memref<64x64xf32, #tpu.memory_space<vmem>>, vector<8x64xf32>
    tpu.vector_store %arg9[%115, %c0_31], %114 {strides = array<i32>} : memref<64x64xf32, #tpu.memory_space<vmem>>, vector<8x64xf32>,
    %c3_i32 = arith.constant 3 : i32
    %c8_i32_32 = arith.constant 8 : i32
    %117 = arith.muli %c3_i32, %c8_i32_32 : i32
    %118 = tpu.assume_multiple %117, 8 : i32
    %119 = arith.index_cast %118 : i32 to index
    %c0_33 = arith.constant 0 : index
    %120 = vector.load %arg11[%119, %c0_33] : memref<64x192xf32, #tpu.memory_space<vmem>>, vector<8x192xf32>
    %121 = arith.truncf %114 : vector<8x64xf32> to vector<8x64xbf16>
    %cst_34 = arith.constant dense<0.000000e+00> : vector<8x192xf32>
    %122 = tpu.matmul %121, %7, %cst_34 {dimension_numbers = #tpu.dot_dimension_numbers<[1], [0], [0], [1], [0, 0, 1, 1], [], []>} : vector<8x64xbf16>, vector<64x192xbf16>, vector<8x192xf32> -> vector<8x192xf32>
    %123 = vector.extract_strided_slice %120 {offsets = [0, 0], sizes = [8, 64], strides = [1, 1]} : vector<8x192xf32> to vector<8x64xf32>
    %124 = vector.extract_strided_slice %122 {offsets = [0, 0], sizes = [8, 64], strides = [1, 1]} : vector<8x192xf32> to vector<8x64xf32>
    %125 = arith.addf %123, %124 : vector<8x64xf32>
    %126 = arith.negf %125 : vector<8x64xf32>
    %127 = math.exp %126 : vector<8x64xf32>
    %cst_35 = arith.constant 1.000000e+00 : f32
    %128 = vector.broadcast %cst_35 : f32 to vector<8x64xf32>
    %129 = arith.addf %128, %127 : vector<8x64xf32>
    %130 = arith.divf %128, %129 : vector<8x64xf32>
    %131 = vector.extract_strided_slice %120 {offsets = [0, 64], sizes = [8, 64], strides = [1, 1]} : vector<8x192xf32> to vector<8x64xf32>
    %132 = vector.extract_strided_slice %122 {offsets = [0, 64], sizes = [8, 64], strides = [1, 1]} : vector<8x192xf32> to vector<8x64xf32>
    %133 = arith.addf %131, %132 : vector<8x64xf32>
    %134 = arith.negf %133 : vector<8x64xf32>
    %135 = math.exp %134 : vector<8x64xf32>
    %cst_36 = arith.constant 1.000000e+00 : f32
    %136 = vector.broadcast %cst_36 : f32 to vector<8x64xf32>
    %137 = arith.addf %136, %135 : vector<8x64xf32>
    %138 = arith.divf %136, %137 : vector<8x64xf32>
    %139 = vector.extract_strided_slice %120 {offsets = [0, 128], sizes = [8, 64], strides = [1, 1]} : vector<8x192xf32> to vector<8x64xf32>
    %140 = vector.extract_strided_slice %122 {offsets = [0, 128], sizes = [8, 64], strides = [1, 1]} : vector<8x192xf32> to vector<8x64xf32>
    %141 = arith.addf %140, %10 : vector<8x64xf32>
    %142 = arith.mulf %130, %141 : vector<8x64xf32>
    %143 = arith.addf %139, %142 : vector<8x64xf32>
    %144 = math.tanh %143 : vector<8x64xf32>
    %cst_37 = arith.constant 1.000000e+00 : f32
    %145 = vector.broadcast %cst_37 : f32 to vector<8x64xf32>
    %146 = arith.subf %145, %138 : vector<8x64xf32>
    %147 = arith.mulf %146, %144 : vector<8x64xf32>
    %148 = arith.mulf %138, %114 : vector<8x64xf32>
    %149 = arith.addf %147, %148 : vector<8x64xf32>
    %150 = arith.index_cast %118 : i32 to index
    %c0_38 = arith.constant 0 : index
    %151 = vector.load %arg9[%150, %c0_38] : memref<64x64xf32, #tpu.memory_space<vmem>>, vector<8x64xf32>
    tpu.vector_store %arg9[%150, %c0_38], %149 {strides = array<i32>} : memref<64x64xf32, #tpu.memory_space<vmem>>, vector<8x64xf32>,
    %c4_i32 = arith.constant 4 : i32
    %c8_i32_39 = arith.constant 8 : i32
    %152 = arith.muli %c4_i32, %c8_i32_39 : i32
    %153 = tpu.assume_multiple %152, 8 : i32
    %154 = arith.index_cast %153 : i32 to index
    %c0_40 = arith.constant 0 : index
    %155 = vector.load %arg11[%154, %c0_40] : memref<64x192xf32, #tpu.memory_space<vmem>>, vector<8x192xf32>
    %156 = arith.truncf %149 : vector<8x64xf32> to vector<8x64xbf16>
    %cst_41 = arith.constant dense<0.000000e+00> : vector<8x192xf32>
    %157 = tpu.matmul %156, %7, %cst_41 {dimension_numbers = #tpu.dot_dimension_numbers<[1], [0], [0], [1], [0, 0, 1, 1], [], []>} : vector<8x64xbf16>, vector<64x192xbf16>, vector<8x192xf32> -> vector<8x192xf32>
    %158 = vector.extract_strided_slice %155 {offsets = [0, 0], sizes = [8, 64], strides = [1, 1]} : vector<8x192xf32> to vector<8x64xf32>
    %159 = vector.extract_strided_slice %157 {offsets = [0, 0], sizes = [8, 64], strides = [1, 1]} : vector<8x192xf32> to vector<8x64xf32>
    %160 = arith.addf %158, %159 : vector<8x64xf32>
    %161 = arith.negf %160 : vector<8x64xf32>
    %162 = math.exp %161 : vector<8x64xf32>
    %cst_42 = arith.constant 1.000000e+00 : f32
    %163 = vector.broadcast %cst_42 : f32 to vector<8x64xf32>
    %164 = arith.addf %163, %162 : vector<8x64xf32>
    %165 = arith.divf %163, %164 : vector<8x64xf32>
    %166 = vector.extract_strided_slice %155 {offsets = [0, 64], sizes = [8, 64], strides = [1, 1]} : vector<8x192xf32> to vector<8x64xf32>
    %167 = vector.extract_strided_slice %157 {offsets = [0, 64], sizes = [8, 64], strides = [1, 1]} : vector<8x192xf32> to vector<8x64xf32>
    %168 = arith.addf %166, %167 : vector<8x64xf32>
    %169 = arith.negf %168 : vector<8x64xf32>
    %170 = math.exp %169 : vector<8x64xf32>
    %cst_43 = arith.constant 1.000000e+00 : f32
    %171 = vector.broadcast %cst_43 : f32 to vector<8x64xf32>
    %172 = arith.addf %171, %170 : vector<8x64xf32>
    %173 = arith.divf %171, %172 : vector<8x64xf32>
    %174 = vector.extract_strided_slice %155 {offsets = [0, 128], sizes = [8, 64], strides = [1, 1]} : vector<8x192xf32> to vector<8x64xf32>
    %175 = vector.extract_strided_slice %157 {offsets = [0, 128], sizes = [8, 64], strides = [1, 1]} : vector<8x192xf32> to vector<8x64xf32>
    %176 = arith.addf %175, %10 : vector<8x64xf32>
    %177 = arith.mulf %165, %176 : vector<8x64xf32>
    %178 = arith.addf %174, %177 : vector<8x64xf32>
    %179 = math.tanh %178 : vector<8x64xf32>
    %cst_44 = arith.constant 1.000000e+00 : f32
    %180 = vector.broadcast %cst_44 : f32 to vector<8x64xf32>
    %181 = arith.subf %180, %173 : vector<8x64xf32>
    %182 = arith.mulf %181, %179 : vector<8x64xf32>
    %183 = arith.mulf %173, %149 : vector<8x64xf32>
    %184 = arith.addf %182, %183 : vector<8x64xf32>
    %185 = arith.index_cast %153 : i32 to index
    %c0_45 = arith.constant 0 : index
    %186 = vector.load %arg9[%185, %c0_45] : memref<64x64xf32, #tpu.memory_space<vmem>>, vector<8x64xf32>
    tpu.vector_store %arg9[%185, %c0_45], %184 {strides = array<i32>} : memref<64x64xf32, #tpu.memory_space<vmem>>, vector<8x64xf32>,
    %c5_i32 = arith.constant 5 : i32
    %c8_i32_46 = arith.constant 8 : i32
    %187 = arith.muli %c5_i32, %c8_i32_46 : i32
    %188 = tpu.assume_multiple %187, 8 : i32
    %189 = arith.index_cast %188 : i32 to index
    %c0_47 = arith.constant 0 : index
    %190 = vector.load %arg11[%189, %c0_47] : memref<64x192xf32, #tpu.memory_space<vmem>>, vector<8x192xf32>
    %191 = arith.truncf %184 : vector<8x64xf32> to vector<8x64xbf16>
    %cst_48 = arith.constant dense<0.000000e+00> : vector<8x192xf32>
    %192 = tpu.matmul %191, %7, %cst_48 {dimension_numbers = #tpu.dot_dimension_numbers<[1], [0], [0], [1], [0, 0, 1, 1], [], []>} : vector<8x64xbf16>, vector<64x192xbf16>, vector<8x192xf32> -> vector<8x192xf32>
    %193 = vector.extract_strided_slice %190 {offsets = [0, 0], sizes = [8, 64], strides = [1, 1]} : vector<8x192xf32> to vector<8x64xf32>
    %194 = vector.extract_strided_slice %192 {offsets = [0, 0], sizes = [8, 64], strides = [1, 1]} : vector<8x192xf32> to vector<8x64xf32>
    %195 = arith.addf %193, %194 : vector<8x64xf32>
    %196 = arith.negf %195 : vector<8x64xf32>
    %197 = math.exp %196 : vector<8x64xf32>
    %cst_49 = arith.constant 1.000000e+00 : f32
    %198 = vector.broadcast %cst_49 : f32 to vector<8x64xf32>
    %199 = arith.addf %198, %197 : vector<8x64xf32>
    %200 = arith.divf %198, %199 : vector<8x64xf32>
    %201 = vector.extract_strided_slice %190 {offsets = [0, 64], sizes = [8, 64], strides = [1, 1]} : vector<8x192xf32> to vector<8x64xf32>
    %202 = vector.extract_strided_slice %192 {offsets = [0, 64], sizes = [8, 64], strides = [1, 1]} : vector<8x192xf32> to vector<8x64xf32>
    %203 = arith.addf %201, %202 : vector<8x64xf32>
    %204 = arith.negf %203 : vector<8x64xf32>
    %205 = math.exp %204 : vector<8x64xf32>
    %cst_50 = arith.constant 1.000000e+00 : f32
    %206 = vector.broadcast %cst_50 : f32 to vector<8x64xf32>
    %207 = arith.addf %206, %205 : vector<8x64xf32>
    %208 = arith.divf %206, %207 : vector<8x64xf32>
    %209 = vector.extract_strided_slice %190 {offsets = [0, 128], sizes = [8, 64], strides = [1, 1]} : vector<8x192xf32> to vector<8x64xf32>
    %210 = vector.extract_strided_slice %192 {offsets = [0, 128], sizes = [8, 64], strides = [1, 1]} : vector<8x192xf32> to vector<8x64xf32>
    %211 = arith.addf %210, %10 : vector<8x64xf32>
    %212 = arith.mulf %200, %211 : vector<8x64xf32>
    %213 = arith.addf %209, %212 : vector<8x64xf32>
    %214 = math.tanh %213 : vector<8x64xf32>
    %cst_51 = arith.constant 1.000000e+00 : f32
    %215 = vector.broadcast %cst_51 : f32 to vector<8x64xf32>
    %216 = arith.subf %215, %208 : vector<8x64xf32>
    %217 = arith.mulf %216, %214 : vector<8x64xf32>
    %218 = arith.mulf %208, %184 : vector<8x64xf32>
    %219 = arith.addf %217, %218 : vector<8x64xf32>
    %220 = arith.index_cast %188 : i32 to index
    %c0_52 = arith.constant 0 : index
    %221 = vector.load %arg9[%220, %c0_52] : memref<64x64xf32, #tpu.memory_space<vmem>>, vector<8x64xf32>
    tpu.vector_store %arg9[%220, %c0_52], %219 {strides = array<i32>} : memref<64x64xf32, #tpu.memory_space<vmem>>, vector<8x64xf32>,
    %c6_i32 = arith.constant 6 : i32
    %c8_i32_53 = arith.constant 8 : i32
    %222 = arith.muli %c6_i32, %c8_i32_53 : i32
    %223 = tpu.assume_multiple %222, 8 : i32
    %224 = arith.index_cast %223 : i32 to index
    %c0_54 = arith.constant 0 : index
    %225 = vector.load %arg11[%224, %c0_54] : memref<64x192xf32, #tpu.memory_space<vmem>>, vector<8x192xf32>
    %226 = arith.truncf %219 : vector<8x64xf32> to vector<8x64xbf16>
    %cst_55 = arith.constant dense<0.000000e+00> : vector<8x192xf32>
    %227 = tpu.matmul %226, %7, %cst_55 {dimension_numbers = #tpu.dot_dimension_numbers<[1], [0], [0], [1], [0, 0, 1, 1], [], []>} : vector<8x64xbf16>, vector<64x192xbf16>, vector<8x192xf32> -> vector<8x192xf32>
    %228 = vector.extract_strided_slice %225 {offsets = [0, 0], sizes = [8, 64], strides = [1, 1]} : vector<8x192xf32> to vector<8x64xf32>
    %229 = vector.extract_strided_slice %227 {offsets = [0, 0], sizes = [8, 64], strides = [1, 1]} : vector<8x192xf32> to vector<8x64xf32>
    %230 = arith.addf %228, %229 : vector<8x64xf32>
    %231 = arith.negf %230 : vector<8x64xf32>
    %232 = math.exp %231 : vector<8x64xf32>
    %cst_56 = arith.constant 1.000000e+00 : f32
    %233 = vector.broadcast %cst_56 : f32 to vector<8x64xf32>
    %234 = arith.addf %233, %232 : vector<8x64xf32>
    %235 = arith.divf %233, %234 : vector<8x64xf32>
    %236 = vector.extract_strided_slice %225 {offsets = [0, 64], sizes = [8, 64], strides = [1, 1]} : vector<8x192xf32> to vector<8x64xf32>
    %237 = vector.extract_strided_slice %227 {offsets = [0, 64], sizes = [8, 64], strides = [1, 1]} : vector<8x192xf32> to vector<8x64xf32>
    %238 = arith.addf %236, %237 : vector<8x64xf32>
    %239 = arith.negf %238 : vector<8x64xf32>
    %240 = math.exp %239 : vector<8x64xf32>
    %cst_57 = arith.constant 1.000000e+00 : f32
    %241 = vector.broadcast %cst_57 : f32 to vector<8x64xf32>
    %242 = arith.addf %241, %240 : vector<8x64xf32>
    %243 = arith.divf %241, %242 : vector<8x64xf32>
    %244 = vector.extract_strided_slice %225 {offsets = [0, 128], sizes = [8, 64], strides = [1, 1]} : vector<8x192xf32> to vector<8x64xf32>
    %245 = vector.extract_strided_slice %227 {offsets = [0, 128], sizes = [8, 64], strides = [1, 1]} : vector<8x192xf32> to vector<8x64xf32>
    %246 = arith.addf %245, %10 : vector<8x64xf32>
    %247 = arith.mulf %235, %246 : vector<8x64xf32>
    %248 = arith.addf %244, %247 : vector<8x64xf32>
    %249 = math.tanh %248 : vector<8x64xf32>
    %cst_58 = arith.constant 1.000000e+00 : f32
    %250 = vector.broadcast %cst_58 : f32 to vector<8x64xf32>
    %251 = arith.subf %250, %243 : vector<8x64xf32>
    %252 = arith.mulf %251, %249 : vector<8x64xf32>
    %253 = arith.mulf %243, %219 : vector<8x64xf32>
    %254 = arith.addf %252, %253 : vector<8x64xf32>
    %255 = arith.index_cast %223 : i32 to index
    %c0_59 = arith.constant 0 : index
    %256 = vector.load %arg9[%255, %c0_59] : memref<64x64xf32, #tpu.memory_space<vmem>>, vector<8x64xf32>
    tpu.vector_store %arg9[%255, %c0_59], %254 {strides = array<i32>} : memref<64x64xf32, #tpu.memory_space<vmem>>, vector<8x64xf32>,
    %c7_i32 = arith.constant 7 : i32
    %c8_i32_60 = arith.constant 8 : i32
    %257 = arith.muli %c7_i32, %c8_i32_60 : i32
    %258 = tpu.assume_multiple %257, 8 : i32
    %259 = arith.index_cast %258 : i32 to index
    %c0_61 = arith.constant 0 : index
    %260 = vector.load %arg11[%259, %c0_61] : memref<64x192xf32, #tpu.memory_space<vmem>>, vector<8x192xf32>
    %261 = arith.truncf %254 : vector<8x64xf32> to vector<8x64xbf16>
    %cst_62 = arith.constant dense<0.000000e+00> : vector<8x192xf32>
    %262 = tpu.matmul %261, %7, %cst_62 {dimension_numbers = #tpu.dot_dimension_numbers<[1], [0], [0], [1], [0, 0, 1, 1], [], []>} : vector<8x64xbf16>, vector<64x192xbf16>, vector<8x192xf32> -> vector<8x192xf32>
    %263 = vector.extract_strided_slice %260 {offsets = [0, 0], sizes = [8, 64], strides = [1, 1]} : vector<8x192xf32> to vector<8x64xf32>
    %264 = vector.extract_strided_slice %262 {offsets = [0, 0], sizes = [8, 64], strides = [1, 1]} : vector<8x192xf32> to vector<8x64xf32>
    %265 = arith.addf %263, %264 : vector<8x64xf32>
    %266 = arith.negf %265 : vector<8x64xf32>
    %267 = math.exp %266 : vector<8x64xf32>
    %cst_63 = arith.constant 1.000000e+00 : f32
    %268 = vector.broadcast %cst_63 : f32 to vector<8x64xf32>
    %269 = arith.addf %268, %267 : vector<8x64xf32>
    %270 = arith.divf %268, %269 : vector<8x64xf32>
    %271 = vector.extract_strided_slice %260 {offsets = [0, 64], sizes = [8, 64], strides = [1, 1]} : vector<8x192xf32> to vector<8x64xf32>
    %272 = vector.extract_strided_slice %262 {offsets = [0, 64], sizes = [8, 64], strides = [1, 1]} : vector<8x192xf32> to vector<8x64xf32>
    %273 = arith.addf %271, %272 : vector<8x64xf32>
    %274 = arith.negf %273 : vector<8x64xf32>
    %275 = math.exp %274 : vector<8x64xf32>
    %cst_64 = arith.constant 1.000000e+00 : f32
    %276 = vector.broadcast %cst_64 : f32 to vector<8x64xf32>
    %277 = arith.addf %276, %275 : vector<8x64xf32>
    %278 = arith.divf %276, %277 : vector<8x64xf32>
    %279 = vector.extract_strided_slice %260 {offsets = [0, 128], sizes = [8, 64], strides = [1, 1]} : vector<8x192xf32> to vector<8x64xf32>
    %280 = vector.extract_strided_slice %262 {offsets = [0, 128], sizes = [8, 64], strides = [1, 1]} : vector<8x192xf32> to vector<8x64xf32>
    %281 = arith.addf %280, %10 : vector<8x64xf32>
    %282 = arith.mulf %270, %281 : vector<8x64xf32>
    %283 = arith.addf %279, %282 : vector<8x64xf32>
    %284 = math.tanh %283 : vector<8x64xf32>
    %cst_65 = arith.constant 1.000000e+00 : f32
    %285 = vector.broadcast %cst_65 : f32 to vector<8x64xf32>
    %286 = arith.subf %285, %278 : vector<8x64xf32>
    %287 = arith.mulf %286, %284 : vector<8x64xf32>
    %288 = arith.mulf %278, %254 : vector<8x64xf32>
    %289 = arith.addf %287, %288 : vector<8x64xf32>
    %290 = arith.index_cast %258 : i32 to index
    %c0_66 = arith.constant 0 : index
    %291 = vector.load %arg9[%290, %c0_66] : memref<64x64xf32, #tpu.memory_space<vmem>>, vector<8x64xf32>
    tpu.vector_store %arg9[%290, %c0_66], %289 {strides = array<i32>} : memref<64x64xf32, #tpu.memory_space<vmem>>, vector<8x64xf32>,
    %c8_i32_67 = arith.constant 8 : i32
    %c0_68 = arith.constant 0 : index
    %c0_69 = arith.constant 0 : index
    %292 = vector.load %arg9[%c0_68, %c0_69] : memref<64x64xf32, #tpu.memory_space<vmem>>, vector<64x64xf32>
    %293 = arith.truncf %292 : vector<64x64xf32> to vector<64x64xbf16>
    %c0_70 = arith.constant 0 : index
    %c0_71 = arith.constant 0 : index
    %294 = vector.load %arg5[%c0_70, %c0_71] : memref<64x192xbf16, #tpu.memory_space<vmem>>, vector<64x192xbf16>
    %cst_72 = arith.constant dense<0.000000e+00> : vector<64x192xf32>
    %295 = tpu.matmul %293, %294, %cst_72 {dimension_numbers = #tpu.dot_dimension_numbers<[1], [0], [0], [1], [0, 0, 1, 1], [], []>} : vector<64x64xbf16>, vector<64x192xbf16>, vector<64x192xf32> -> vector<64x192xf32>
    %c0_73 = arith.constant 0 : index
    %c0_74 = arith.constant 0 : index
    %296 = vector.load %arg6[%c0_73, %c0_74] : memref<1x192xf32, #tpu.memory_space<vmem>>, vector<1x192xf32>
    %297 = vector.broadcast %296 : vector<1x192xf32> to vector<64x192xf32>
    %298 = arith.addf %295, %297 : vector<64x192xf32>
    %c0_75 = arith.constant 0 : index
    %c0_76 = arith.constant 0 : index
    %299 = vector.load %arg11[%c0_75, %c0_76] : memref<64x192xf32, #tpu.memory_space<vmem>>, vector<64x192xf32>
    tpu.vector_store %arg11[%c0_75, %c0_76], %298 {strides = array<i32>} : memref<64x192xf32, #tpu.memory_space<vmem>>, vector<64x192xf32>,
    %c0_77 = arith.constant 0 : index
    %c0_78 = arith.constant 0 : index
    %300 = vector.load %arg7[%c0_77, %c0_78] : memref<64x192xbf16, #tpu.memory_space<vmem>>, vector<64x192xbf16>
    %c0_79 = arith.constant 0 : index
    %c0_80 = arith.constant 0 : index
    %301 = vector.load %arg8[%c0_79, %c0_80] : memref<1x64xf32, #tpu.memory_space<vmem>>, vector<1x64xf32>
    %302 = vector.shape_cast %301 : vector<1x64xf32> to vector<1x64xf32>
    %303 = vector.broadcast %302 : vector<1x64xf32> to vector<8x64xf32>
    %cst_81 = arith.constant 0.000000e+00 : f32
    %304 = vector.broadcast %cst_81 : f32 to vector<8x64xf32>
    %c0_i32_82 = arith.constant 0 : i32
    %c8_i32_83 = arith.constant 8 : i32
    %305 = arith.muli %c0_i32_82, %c8_i32_83 : i32
    %306 = tpu.assume_multiple %305, 8 : i32
    %307 = arith.index_cast %306 : i32 to index
    %c0_84 = arith.constant 0 : index
    %308 = vector.load %arg11[%307, %c0_84] : memref<64x192xf32, #tpu.memory_space<vmem>>, vector<8x192xf32>
    %309 = arith.truncf %304 : vector<8x64xf32> to vector<8x64xbf16>
    %cst_85 = arith.constant dense<0.000000e+00> : vector<8x192xf32>
    %310 = tpu.matmul %309, %300, %cst_85 {dimension_numbers = #tpu.dot_dimension_numbers<[1], [0], [0], [1], [0, 0, 1, 1], [], []>} : vector<8x64xbf16>, vector<64x192xbf16>, vector<8x192xf32> -> vector<8x192xf32>
    %311 = vector.extract_strided_slice %308 {offsets = [0, 0], sizes = [8, 64], strides = [1, 1]} : vector<8x192xf32> to vector<8x64xf32>
    %312 = vector.extract_strided_slice %310 {offsets = [0, 0], sizes = [8, 64], strides = [1, 1]} : vector<8x192xf32> to vector<8x64xf32>
    %313 = arith.addf %311, %312 : vector<8x64xf32>
    %314 = arith.negf %313 : vector<8x64xf32>
    %315 = math.exp %314 : vector<8x64xf32>
    %cst_86 = arith.constant 1.000000e+00 : f32
    %316 = vector.broadcast %cst_86 : f32 to vector<8x64xf32>
    %317 = arith.addf %316, %315 : vector<8x64xf32>
    %318 = arith.divf %316, %317 : vector<8x64xf32>
    %319 = vector.extract_strided_slice %308 {offsets = [0, 64], sizes = [8, 64], strides = [1, 1]} : vector<8x192xf32> to vector<8x64xf32>
    %320 = vector.extract_strided_slice %310 {offsets = [0, 64], sizes = [8, 64], strides = [1, 1]} : vector<8x192xf32> to vector<8x64xf32>
    %321 = arith.addf %319, %320 : vector<8x64xf32>
    %322 = arith.negf %321 : vector<8x64xf32>
    %323 = math.exp %322 : vector<8x64xf32>
    %cst_87 = arith.constant 1.000000e+00 : f32
    %324 = vector.broadcast %cst_87 : f32 to vector<8x64xf32>
    %325 = arith.addf %324, %323 : vector<8x64xf32>
    %326 = arith.divf %324, %325 : vector<8x64xf32>
    %327 = vector.extract_strided_slice %308 {offsets = [0, 128], sizes = [8, 64], strides = [1, 1]} : vector<8x192xf32> to vector<8x64xf32>
    %328 = vector.extract_strided_slice %310 {offsets = [0, 128], sizes = [8, 64], strides = [1, 1]} : vector<8x192xf32> to vector<8x64xf32>
    %329 = arith.addf %328, %303 : vector<8x64xf32>
    %330 = arith.mulf %318, %329 : vector<8x64xf32>
    %331 = arith.addf %327, %330 : vector<8x64xf32>
    %332 = math.tanh %331 : vector<8x64xf32>
    %cst_88 = arith.constant 1.000000e+00 : f32
    %333 = vector.broadcast %cst_88 : f32 to vector<8x64xf32>
    %334 = arith.subf %333, %326 : vector<8x64xf32>
    %335 = arith.mulf %334, %332 : vector<8x64xf32>
    %336 = arith.mulf %326, %304 : vector<8x64xf32>
    %337 = arith.addf %335, %336 : vector<8x64xf32>
    %338 = arith.index_cast %306 : i32 to index
    %c0_89 = arith.constant 0 : index
    %339 = vector.load %arg10[%338, %c0_89] : memref<64x64xf32, #tpu.memory_space<vmem>>, vector<8x64xf32>
    tpu.vector_store %arg10[%338, %c0_89], %337 {strides = array<i32>} : memref<64x64xf32, #tpu.memory_space<vmem>>, vector<8x64xf32>,
    %c1_i32_90 = arith.constant 1 : i32
    %c8_i32_91 = arith.constant 8 : i32
    %340 = arith.muli %c1_i32_90, %c8_i32_91 : i32
    %341 = tpu.assume_multiple %340, 8 : i32
    %342 = arith.index_cast %341 : i32 to index
    %c0_92 = arith.constant 0 : index
    %343 = vector.load %arg11[%342, %c0_92] : memref<64x192xf32, #tpu.memory_space<vmem>>, vector<8x192xf32>
    %344 = arith.truncf %337 : vector<8x64xf32> to vector<8x64xbf16>
    %cst_93 = arith.constant dense<0.000000e+00> : vector<8x192xf32>
    %345 = tpu.matmul %344, %300, %cst_93 {dimension_numbers = #tpu.dot_dimension_numbers<[1], [0], [0], [1], [0, 0, 1, 1], [], []>} : vector<8x64xbf16>, vector<64x192xbf16>, vector<8x192xf32> -> vector<8x192xf32>
    %346 = vector.extract_strided_slice %343 {offsets = [0, 0], sizes = [8, 64], strides = [1, 1]} : vector<8x192xf32> to vector<8x64xf32>
    %347 = vector.extract_strided_slice %345 {offsets = [0, 0], sizes = [8, 64], strides = [1, 1]} : vector<8x192xf32> to vector<8x64xf32>
    %348 = arith.addf %346, %347 : vector<8x64xf32>
    %349 = arith.negf %348 : vector<8x64xf32>
    %350 = math.exp %349 : vector<8x64xf32>
    %cst_94 = arith.constant 1.000000e+00 : f32
    %351 = vector.broadcast %cst_94 : f32 to vector<8x64xf32>
    %352 = arith.addf %351, %350 : vector<8x64xf32>
    %353 = arith.divf %351, %352 : vector<8x64xf32>
    %354 = vector.extract_strided_slice %343 {offsets = [0, 64], sizes = [8, 64], strides = [1, 1]} : vector<8x192xf32> to vector<8x64xf32>
    %355 = vector.extract_strided_slice %345 {offsets = [0, 64], sizes = [8, 64], strides = [1, 1]} : vector<8x192xf32> to vector<8x64xf32>
    %356 = arith.addf %354, %355 : vector<8x64xf32>
    %357 = arith.negf %356 : vector<8x64xf32>
    %358 = math.exp %357 : vector<8x64xf32>
    %cst_95 = arith.constant 1.000000e+00 : f32
    %359 = vector.broadcast %cst_95 : f32 to vector<8x64xf32>
    %360 = arith.addf %359, %358 : vector<8x64xf32>
    %361 = arith.divf %359, %360 : vector<8x64xf32>
    %362 = vector.extract_strided_slice %343 {offsets = [0, 128], sizes = [8, 64], strides = [1, 1]} : vector<8x192xf32> to vector<8x64xf32>
    %363 = vector.extract_strided_slice %345 {offsets = [0, 128], sizes = [8, 64], strides = [1, 1]} : vector<8x192xf32> to vector<8x64xf32>
    %364 = arith.addf %363, %303 : vector<8x64xf32>
    %365 = arith.mulf %353, %364 : vector<8x64xf32>
    %366 = arith.addf %362, %365 : vector<8x64xf32>
    %367 = math.tanh %366 : vector<8x64xf32>
    %cst_96 = arith.constant 1.000000e+00 : f32
    %368 = vector.broadcast %cst_96 : f32 to vector<8x64xf32>
    %369 = arith.subf %368, %361 : vector<8x64xf32>
    %370 = arith.mulf %369, %367 : vector<8x64xf32>
    %371 = arith.mulf %361, %337 : vector<8x64xf32>
    %372 = arith.addf %370, %371 : vector<8x64xf32>
    %373 = arith.index_cast %341 : i32 to index
    %c0_97 = arith.constant 0 : index
    %374 = vector.load %arg10[%373, %c0_97] : memref<64x64xf32, #tpu.memory_space<vmem>>, vector<8x64xf32>
    tpu.vector_store %arg10[%373, %c0_97], %372 {strides = array<i32>} : memref<64x64xf32, #tpu.memory_space<vmem>>, vector<8x64xf32>,
    %c2_i32_98 = arith.constant 2 : i32
    %c8_i32_99 = arith.constant 8 : i32
    %375 = arith.muli %c2_i32_98, %c8_i32_99 : i32
    %376 = tpu.assume_multiple %375, 8 : i32
    %377 = arith.index_cast %376 : i32 to index
    %c0_100 = arith.constant 0 : index
    %378 = vector.load %arg11[%377, %c0_100] : memref<64x192xf32, #tpu.memory_space<vmem>>, vector<8x192xf32>
    %379 = arith.truncf %372 : vector<8x64xf32> to vector<8x64xbf16>
    %cst_101 = arith.constant dense<0.000000e+00> : vector<8x192xf32>
    %380 = tpu.matmul %379, %300, %cst_101 {dimension_numbers = #tpu.dot_dimension_numbers<[1], [0], [0], [1], [0, 0, 1, 1], [], []>} : vector<8x64xbf16>, vector<64x192xbf16>, vector<8x192xf32> -> vector<8x192xf32>
    %381 = vector.extract_strided_slice %378 {offsets = [0, 0], sizes = [8, 64], strides = [1, 1]} : vector<8x192xf32> to vector<8x64xf32>
    %382 = vector.extract_strided_slice %380 {offsets = [0, 0], sizes = [8, 64], strides = [1, 1]} : vector<8x192xf32> to vector<8x64xf32>
    %383 = arith.addf %381, %382 : vector<8x64xf32>
    %384 = arith.negf %383 : vector<8x64xf32>
    %385 = math.exp %384 : vector<8x64xf32>
    %cst_102 = arith.constant 1.000000e+00 : f32
    %386 = vector.broadcast %cst_102 : f32 to vector<8x64xf32>
    %387 = arith.addf %386, %385 : vector<8x64xf32>
    %388 = arith.divf %386, %387 : vector<8x64xf32>
    %389 = vector.extract_strided_slice %378 {offsets = [0, 64], sizes = [8, 64], strides = [1, 1]} : vector<8x192xf32> to vector<8x64xf32>
    %390 = vector.extract_strided_slice %380 {offsets = [0, 64], sizes = [8, 64], strides = [1, 1]} : vector<8x192xf32> to vector<8x64xf32>
    %391 = arith.addf %389, %390 : vector<8x64xf32>
    %392 = arith.negf %391 : vector<8x64xf32>
    %393 = math.exp %392 : vector<8x64xf32>
    %cst_103 = arith.constant 1.000000e+00 : f32
    %394 = vector.broadcast %cst_103 : f32 to vector<8x64xf32>
    %395 = arith.addf %394, %393 : vector<8x64xf32>
    %396 = arith.divf %394, %395 : vector<8x64xf32>
    %397 = vector.extract_strided_slice %378 {offsets = [0, 128], sizes = [8, 64], strides = [1, 1]} : vector<8x192xf32> to vector<8x64xf32>
    %398 = vector.extract_strided_slice %380 {offsets = [0, 128], sizes = [8, 64], strides = [1, 1]} : vector<8x192xf32> to vector<8x64xf32>
    %399 = arith.addf %398, %303 : vector<8x64xf32>
    %400 = arith.mulf %388, %399 : vector<8x64xf32>
    %401 = arith.addf %397, %400 : vector<8x64xf32>
    %402 = math.tanh %401 : vector<8x64xf32>
    %cst_104 = arith.constant 1.000000e+00 : f32
    %403 = vector.broadcast %cst_104 : f32 to vector<8x64xf32>
    %404 = arith.subf %403, %396 : vector<8x64xf32>
    %405 = arith.mulf %404, %402 : vector<8x64xf32>
    %406 = arith.mulf %396, %372 : vector<8x64xf32>
    %407 = arith.addf %405, %406 : vector<8x64xf32>
    %408 = arith.index_cast %376 : i32 to index
    %c0_105 = arith.constant 0 : index
    %409 = vector.load %arg10[%408, %c0_105] : memref<64x64xf32, #tpu.memory_space<vmem>>, vector<8x64xf32>
    tpu.vector_store %arg10[%408, %c0_105], %407 {strides = array<i32>} : memref<64x64xf32, #tpu.memory_space<vmem>>, vector<8x64xf32>,
    %c3_i32_106 = arith.constant 3 : i32
    %c8_i32_107 = arith.constant 8 : i32
    %410 = arith.muli %c3_i32_106, %c8_i32_107 : i32
    %411 = tpu.assume_multiple %410, 8 : i32
    %412 = arith.index_cast %411 : i32 to index
    %c0_108 = arith.constant 0 : index
    %413 = vector.load %arg11[%412, %c0_108] : memref<64x192xf32, #tpu.memory_space<vmem>>, vector<8x192xf32>
    %414 = arith.truncf %407 : vector<8x64xf32> to vector<8x64xbf16>
    %cst_109 = arith.constant dense<0.000000e+00> : vector<8x192xf32>
    %415 = tpu.matmul %414, %300, %cst_109 {dimension_numbers = #tpu.dot_dimension_numbers<[1], [0], [0], [1], [0, 0, 1, 1], [], []>} : vector<8x64xbf16>, vector<64x192xbf16>, vector<8x192xf32> -> vector<8x192xf32>
    %416 = vector.extract_strided_slice %413 {offsets = [0, 0], sizes = [8, 64], strides = [1, 1]} : vector<8x192xf32> to vector<8x64xf32>
    %417 = vector.extract_strided_slice %415 {offsets = [0, 0], sizes = [8, 64], strides = [1, 1]} : vector<8x192xf32> to vector<8x64xf32>
    %418 = arith.addf %416, %417 : vector<8x64xf32>
    %419 = arith.negf %418 : vector<8x64xf32>
    %420 = math.exp %419 : vector<8x64xf32>
    %cst_110 = arith.constant 1.000000e+00 : f32
    %421 = vector.broadcast %cst_110 : f32 to vector<8x64xf32>
    %422 = arith.addf %421, %420 : vector<8x64xf32>
    %423 = arith.divf %421, %422 : vector<8x64xf32>
    %424 = vector.extract_strided_slice %413 {offsets = [0, 64], sizes = [8, 64], strides = [1, 1]} : vector<8x192xf32> to vector<8x64xf32>
    %425 = vector.extract_strided_slice %415 {offsets = [0, 64], sizes = [8, 64], strides = [1, 1]} : vector<8x192xf32> to vector<8x64xf32>
    %426 = arith.addf %424, %425 : vector<8x64xf32>
    %427 = arith.negf %426 : vector<8x64xf32>
    %428 = math.exp %427 : vector<8x64xf32>
    %cst_111 = arith.constant 1.000000e+00 : f32
    %429 = vector.broadcast %cst_111 : f32 to vector<8x64xf32>
    %430 = arith.addf %429, %428 : vector<8x64xf32>
    %431 = arith.divf %429, %430 : vector<8x64xf32>
    %432 = vector.extract_strided_slice %413 {offsets = [0, 128], sizes = [8, 64], strides = [1, 1]} : vector<8x192xf32> to vector<8x64xf32>
    %433 = vector.extract_strided_slice %415 {offsets = [0, 128], sizes = [8, 64], strides = [1, 1]} : vector<8x192xf32> to vector<8x64xf32>
    %434 = arith.addf %433, %303 : vector<8x64xf32>
    %435 = arith.mulf %423, %434 : vector<8x64xf32>
    %436 = arith.addf %432, %435 : vector<8x64xf32>
    %437 = math.tanh %436 : vector<8x64xf32>
    %cst_112 = arith.constant 1.000000e+00 : f32
    %438 = vector.broadcast %cst_112 : f32 to vector<8x64xf32>
    %439 = arith.subf %438, %431 : vector<8x64xf32>
    %440 = arith.mulf %439, %437 : vector<8x64xf32>
    %441 = arith.mulf %431, %407 : vector<8x64xf32>
    %442 = arith.addf %440, %441 : vector<8x64xf32>
    %443 = arith.index_cast %411 : i32 to index
    %c0_113 = arith.constant 0 : index
    %444 = vector.load %arg10[%443, %c0_113] : memref<64x64xf32, #tpu.memory_space<vmem>>, vector<8x64xf32>
    tpu.vector_store %arg10[%443, %c0_113], %442 {strides = array<i32>} : memref<64x64xf32, #tpu.memory_space<vmem>>, vector<8x64xf32>,
    %c4_i32_114 = arith.constant 4 : i32
    %c8_i32_115 = arith.constant 8 : i32
    %445 = arith.muli %c4_i32_114, %c8_i32_115 : i32
    %446 = tpu.assume_multiple %445, 8 : i32
    %447 = arith.index_cast %446 : i32 to index
    %c0_116 = arith.constant 0 : index
    %448 = vector.load %arg11[%447, %c0_116] : memref<64x192xf32, #tpu.memory_space<vmem>>, vector<8x192xf32>
    %449 = arith.truncf %442 : vector<8x64xf32> to vector<8x64xbf16>
    %cst_117 = arith.constant dense<0.000000e+00> : vector<8x192xf32>
    %450 = tpu.matmul %449, %300, %cst_117 {dimension_numbers = #tpu.dot_dimension_numbers<[1], [0], [0], [1], [0, 0, 1, 1], [], []>} : vector<8x64xbf16>, vector<64x192xbf16>, vector<8x192xf32> -> vector<8x192xf32>
    %451 = vector.extract_strided_slice %448 {offsets = [0, 0], sizes = [8, 64], strides = [1, 1]} : vector<8x192xf32> to vector<8x64xf32>
    %452 = vector.extract_strided_slice %450 {offsets = [0, 0], sizes = [8, 64], strides = [1, 1]} : vector<8x192xf32> to vector<8x64xf32>
    %453 = arith.addf %451, %452 : vector<8x64xf32>
    %454 = arith.negf %453 : vector<8x64xf32>
    %455 = math.exp %454 : vector<8x64xf32>
    %cst_118 = arith.constant 1.000000e+00 : f32
    %456 = vector.broadcast %cst_118 : f32 to vector<8x64xf32>
    %457 = arith.addf %456, %455 : vector<8x64xf32>
    %458 = arith.divf %456, %457 : vector<8x64xf32>
    %459 = vector.extract_strided_slice %448 {offsets = [0, 64], sizes = [8, 64], strides = [1, 1]} : vector<8x192xf32> to vector<8x64xf32>
    %460 = vector.extract_strided_slice %450 {offsets = [0, 64], sizes = [8, 64], strides = [1, 1]} : vector<8x192xf32> to vector<8x64xf32>
    %461 = arith.addf %459, %460 : vector<8x64xf32>
    %462 = arith.negf %461 : vector<8x64xf32>
    %463 = math.exp %462 : vector<8x64xf32>
    %cst_119 = arith.constant 1.000000e+00 : f32
    %464 = vector.broadcast %cst_119 : f32 to vector<8x64xf32>
    %465 = arith.addf %464, %463 : vector<8x64xf32>
    %466 = arith.divf %464, %465 : vector<8x64xf32>
    %467 = vector.extract_strided_slice %448 {offsets = [0, 128], sizes = [8, 64], strides = [1, 1]} : vector<8x192xf32> to vector<8x64xf32>
    %468 = vector.extract_strided_slice %450 {offsets = [0, 128], sizes = [8, 64], strides = [1, 1]} : vector<8x192xf32> to vector<8x64xf32>
    %469 = arith.addf %468, %303 : vector<8x64xf32>
    %470 = arith.mulf %458, %469 : vector<8x64xf32>
    %471 = arith.addf %467, %470 : vector<8x64xf32>
    %472 = math.tanh %471 : vector<8x64xf32>
    %cst_120 = arith.constant 1.000000e+00 : f32
    %473 = vector.broadcast %cst_120 : f32 to vector<8x64xf32>
    %474 = arith.subf %473, %466 : vector<8x64xf32>
    %475 = arith.mulf %474, %472 : vector<8x64xf32>
    %476 = arith.mulf %466, %442 : vector<8x64xf32>
    %477 = arith.addf %475, %476 : vector<8x64xf32>
    %478 = arith.index_cast %446 : i32 to index
    %c0_121 = arith.constant 0 : index
    %479 = vector.load %arg10[%478, %c0_121] : memref<64x64xf32, #tpu.memory_space<vmem>>, vector<8x64xf32>
    tpu.vector_store %arg10[%478, %c0_121], %477 {strides = array<i32>} : memref<64x64xf32, #tpu.memory_space<vmem>>, vector<8x64xf32>,
    %c5_i32_122 = arith.constant 5 : i32
    %c8_i32_123 = arith.constant 8 : i32
    %480 = arith.muli %c5_i32_122, %c8_i32_123 : i32
    %481 = tpu.assume_multiple %480, 8 : i32
    %482 = arith.index_cast %481 : i32 to index
    %c0_124 = arith.constant 0 : index
    %483 = vector.load %arg11[%482, %c0_124] : memref<64x192xf32, #tpu.memory_space<vmem>>, vector<8x192xf32>
    %484 = arith.truncf %477 : vector<8x64xf32> to vector<8x64xbf16>
    %cst_125 = arith.constant dense<0.000000e+00> : vector<8x192xf32>
    %485 = tpu.matmul %484, %300, %cst_125 {dimension_numbers = #tpu.dot_dimension_numbers<[1], [0], [0], [1], [0, 0, 1, 1], [], []>} : vector<8x64xbf16>, vector<64x192xbf16>, vector<8x192xf32> -> vector<8x192xf32>
    %486 = vector.extract_strided_slice %483 {offsets = [0, 0], sizes = [8, 64], strides = [1, 1]} : vector<8x192xf32> to vector<8x64xf32>
    %487 = vector.extract_strided_slice %485 {offsets = [0, 0], sizes = [8, 64], strides = [1, 1]} : vector<8x192xf32> to vector<8x64xf32>
    %488 = arith.addf %486, %487 : vector<8x64xf32>
    %489 = arith.negf %488 : vector<8x64xf32>
    %490 = math.exp %489 : vector<8x64xf32>
    %cst_126 = arith.constant 1.000000e+00 : f32
    %491 = vector.broadcast %cst_126 : f32 to vector<8x64xf32>
    %492 = arith.addf %491, %490 : vector<8x64xf32>
    %493 = arith.divf %491, %492 : vector<8x64xf32>
    %494 = vector.extract_strided_slice %483 {offsets = [0, 64], sizes = [8, 64], strides = [1, 1]} : vector<8x192xf32> to vector<8x64xf32>
    %495 = vector.extract_strided_slice %485 {offsets = [0, 64], sizes = [8, 64], strides = [1, 1]} : vector<8x192xf32> to vector<8x64xf32>
    %496 = arith.addf %494, %495 : vector<8x64xf32>
    %497 = arith.negf %496 : vector<8x64xf32>
    %498 = math.exp %497 : vector<8x64xf32>
    %cst_127 = arith.constant 1.000000e+00 : f32
    %499 = vector.broadcast %cst_127 : f32 to vector<8x64xf32>
    %500 = arith.addf %499, %498 : vector<8x64xf32>
    %501 = arith.divf %499, %500 : vector<8x64xf32>
    %502 = vector.extract_strided_slice %483 {offsets = [0, 128], sizes = [8, 64], strides = [1, 1]} : vector<8x192xf32> to vector<8x64xf32>
    %503 = vector.extract_strided_slice %485 {offsets = [0, 128], sizes = [8, 64], strides = [1, 1]} : vector<8x192xf32> to vector<8x64xf32>
    %504 = arith.addf %503, %303 : vector<8x64xf32>
    %505 = arith.mulf %493, %504 : vector<8x64xf32>
    %506 = arith.addf %502, %505 : vector<8x64xf32>
    %507 = math.tanh %506 : vector<8x64xf32>
    %cst_128 = arith.constant 1.000000e+00 : f32
    %508 = vector.broadcast %cst_128 : f32 to vector<8x64xf32>
    %509 = arith.subf %508, %501 : vector<8x64xf32>
    %510 = arith.mulf %509, %507 : vector<8x64xf32>
    %511 = arith.mulf %501, %477 : vector<8x64xf32>
    %512 = arith.addf %510, %511 : vector<8x64xf32>
    %513 = arith.index_cast %481 : i32 to index
    %c0_129 = arith.constant 0 : index
    %514 = vector.load %arg10[%513, %c0_129] : memref<64x64xf32, #tpu.memory_space<vmem>>, vector<8x64xf32>
    tpu.vector_store %arg10[%513, %c0_129], %512 {strides = array<i32>} : memref<64x64xf32, #tpu.memory_space<vmem>>, vector<8x64xf32>,
    %c6_i32_130 = arith.constant 6 : i32
    %c8_i32_131 = arith.constant 8 : i32
    %515 = arith.muli %c6_i32_130, %c8_i32_131 : i32
    %516 = tpu.assume_multiple %515, 8 : i32
    %517 = arith.index_cast %516 : i32 to index
    %c0_132 = arith.constant 0 : index
    %518 = vector.load %arg11[%517, %c0_132] : memref<64x192xf32, #tpu.memory_space<vmem>>, vector<8x192xf32>
    %519 = arith.truncf %512 : vector<8x64xf32> to vector<8x64xbf16>
    %cst_133 = arith.constant dense<0.000000e+00> : vector<8x192xf32>
    %520 = tpu.matmul %519, %300, %cst_133 {dimension_numbers = #tpu.dot_dimension_numbers<[1], [0], [0], [1], [0, 0, 1, 1], [], []>} : vector<8x64xbf16>, vector<64x192xbf16>, vector<8x192xf32> -> vector<8x192xf32>
    %521 = vector.extract_strided_slice %518 {offsets = [0, 0], sizes = [8, 64], strides = [1, 1]} : vector<8x192xf32> to vector<8x64xf32>
    %522 = vector.extract_strided_slice %520 {offsets = [0, 0], sizes = [8, 64], strides = [1, 1]} : vector<8x192xf32> to vector<8x64xf32>
    %523 = arith.addf %521, %522 : vector<8x64xf32>
    %524 = arith.negf %523 : vector<8x64xf32>
    %525 = math.exp %524 : vector<8x64xf32>
    %cst_134 = arith.constant 1.000000e+00 : f32
    %526 = vector.broadcast %cst_134 : f32 to vector<8x64xf32>
    %527 = arith.addf %526, %525 : vector<8x64xf32>
    %528 = arith.divf %526, %527 : vector<8x64xf32>
    %529 = vector.extract_strided_slice %518 {offsets = [0, 64], sizes = [8, 64], strides = [1, 1]} : vector<8x192xf32> to vector<8x64xf32>
    %530 = vector.extract_strided_slice %520 {offsets = [0, 64], sizes = [8, 64], strides = [1, 1]} : vector<8x192xf32> to vector<8x64xf32>
    %531 = arith.addf %529, %530 : vector<8x64xf32>
    %532 = arith.negf %531 : vector<8x64xf32>
    %533 = math.exp %532 : vector<8x64xf32>
    %cst_135 = arith.constant 1.000000e+00 : f32
    %534 = vector.broadcast %cst_135 : f32 to vector<8x64xf32>
    %535 = arith.addf %534, %533 : vector<8x64xf32>
    %536 = arith.divf %534, %535 : vector<8x64xf32>
    %537 = vector.extract_strided_slice %518 {offsets = [0, 128], sizes = [8, 64], strides = [1, 1]} : vector<8x192xf32> to vector<8x64xf32>
    %538 = vector.extract_strided_slice %520 {offsets = [0, 128], sizes = [8, 64], strides = [1, 1]} : vector<8x192xf32> to vector<8x64xf32>
    %539 = arith.addf %538, %303 : vector<8x64xf32>
    %540 = arith.mulf %528, %539 : vector<8x64xf32>
    %541 = arith.addf %537, %540 : vector<8x64xf32>
    %542 = math.tanh %541 : vector<8x64xf32>
    %cst_136 = arith.constant 1.000000e+00 : f32
    %543 = vector.broadcast %cst_136 : f32 to vector<8x64xf32>
    %544 = arith.subf %543, %536 : vector<8x64xf32>
    %545 = arith.mulf %544, %542 : vector<8x64xf32>
    %546 = arith.mulf %536, %512 : vector<8x64xf32>
    %547 = arith.addf %545, %546 : vector<8x64xf32>
    %548 = arith.index_cast %516 : i32 to index
    %c0_137 = arith.constant 0 : index
    %549 = vector.load %arg10[%548, %c0_137] : memref<64x64xf32, #tpu.memory_space<vmem>>, vector<8x64xf32>
    tpu.vector_store %arg10[%548, %c0_137], %547 {strides = array<i32>} : memref<64x64xf32, #tpu.memory_space<vmem>>, vector<8x64xf32>,
    %c7_i32_138 = arith.constant 7 : i32
    %c8_i32_139 = arith.constant 8 : i32
    %550 = arith.muli %c7_i32_138, %c8_i32_139 : i32
    %551 = tpu.assume_multiple %550, 8 : i32
    %552 = arith.index_cast %551 : i32 to index
    %c0_140 = arith.constant 0 : index
    %553 = vector.load %arg11[%552, %c0_140] : memref<64x192xf32, #tpu.memory_space<vmem>>, vector<8x192xf32>
    %554 = arith.truncf %547 : vector<8x64xf32> to vector<8x64xbf16>
    %cst_141 = arith.constant dense<0.000000e+00> : vector<8x192xf32>
    %555 = tpu.matmul %554, %300, %cst_141 {dimension_numbers = #tpu.dot_dimension_numbers<[1], [0], [0], [1], [0, 0, 1, 1], [], []>} : vector<8x64xbf16>, vector<64x192xbf16>, vector<8x192xf32> -> vector<8x192xf32>
    %556 = vector.extract_strided_slice %553 {offsets = [0, 0], sizes = [8, 64], strides = [1, 1]} : vector<8x192xf32> to vector<8x64xf32>
    %557 = vector.extract_strided_slice %555 {offsets = [0, 0], sizes = [8, 64], strides = [1, 1]} : vector<8x192xf32> to vector<8x64xf32>
    %558 = arith.addf %556, %557 : vector<8x64xf32>
    %559 = arith.negf %558 : vector<8x64xf32>
    %560 = math.exp %559 : vector<8x64xf32>
    %cst_142 = arith.constant 1.000000e+00 : f32
    %561 = vector.broadcast %cst_142 : f32 to vector<8x64xf32>
    %562 = arith.addf %561, %560 : vector<8x64xf32>
    %563 = arith.divf %561, %562 : vector<8x64xf32>
    %564 = vector.extract_strided_slice %553 {offsets = [0, 64], sizes = [8, 64], strides = [1, 1]} : vector<8x192xf32> to vector<8x64xf32>
    %565 = vector.extract_strided_slice %555 {offsets = [0, 64], sizes = [8, 64], strides = [1, 1]} : vector<8x192xf32> to vector<8x64xf32>
    %566 = arith.addf %564, %565 : vector<8x64xf32>
    %567 = arith.negf %566 : vector<8x64xf32>
    %568 = math.exp %567 : vector<8x64xf32>
    %cst_143 = arith.constant 1.000000e+00 : f32
    %569 = vector.broadcast %cst_143 : f32 to vector<8x64xf32>
    %570 = arith.addf %569, %568 : vector<8x64xf32>
    %571 = arith.divf %569, %570 : vector<8x64xf32>
    %572 = vector.extract_strided_slice %553 {offsets = [0, 128], sizes = [8, 64], strides = [1, 1]} : vector<8x192xf32> to vector<8x64xf32>
    %573 = vector.extract_strided_slice %555 {offsets = [0, 128], sizes = [8, 64], strides = [1, 1]} : vector<8x192xf32> to vector<8x64xf32>
    %574 = arith.addf %573, %303 : vector<8x64xf32>
    %575 = arith.mulf %563, %574 : vector<8x64xf32>
    %576 = arith.addf %572, %575 : vector<8x64xf32>
    %577 = math.tanh %576 : vector<8x64xf32>
    %cst_144 = arith.constant 1.000000e+00 : f32
    %578 = vector.broadcast %cst_144 : f32 to vector<8x64xf32>
    %579 = arith.subf %578, %571 : vector<8x64xf32>
    %580 = arith.mulf %579, %577 : vector<8x64xf32>
    %581 = arith.mulf %571, %547 : vector<8x64xf32>
    %582 = arith.addf %580, %581 : vector<8x64xf32>
    %583 = arith.index_cast %551 : i32 to index
    %c0_145 = arith.constant 0 : index
    %584 = vector.load %arg10[%583, %c0_145] : memref<64x64xf32, #tpu.memory_space<vmem>>, vector<8x64xf32>
    tpu.vector_store %arg10[%583, %c0_145], %582 {strides = array<i32>} : memref<64x64xf32, #tpu.memory_space<vmem>>, vector<8x64xf32>,
    %c8_i32_146 = arith.constant 8 : i32
    return
  }
}

</mosaic_0001>

<llo_original>
// kernel: encoder_birnn_forward.1
$region0: #{encoder_birnn_forward.1}
  #allocation0 [shape = 'u32[]', space=smem, size = 0x4, offset = 0x4, fixed_abs, tag = 'smem constant byte address 0x4 - core index']
  #allocation1 [shape = 'u32[144,128]{1,0:T(1,128)}', space=vmem, size = 0x12000, scoped, tag = 'internal scratch']
  #allocation2 [shape = 'f32[64,192]{1,0:T(8,128)}', space=vmem, size = 0x10000, scoped, tag = 'scratch operand']
  %s0 = inlined_call_operand.vmem [shape: bf16[64,16], index: 0, kind: input, shape index: {}]
  %s1 = inlined_call_operand.vmem [shape: bf16[16,192], index: 1, kind: input, shape index: {}]
  %s2 = inlined_call_operand.vmem [shape: f32[1,192], index: 2, kind: input, shape index: {}]
  %s3 = inlined_call_operand.vmem [shape: bf16[64,192], index: 3, kind: input, shape index: {}]
  %s4 = inlined_call_operand.vmem [shape: f32[1,64], index: 4, kind: input, shape index: {}]
  %s5 = inlined_call_operand.vmem [shape: bf16[64,192], index: 5, kind: input, shape index: {}]
  %s6 = inlined_call_operand.vmem [shape: f32[1,192], index: 6, kind: input, shape index: {}]
  %s7 = inlined_call_operand.vmem [shape: bf16[64,192], index: 7, kind: input, shape index: {}]
  %s8 = inlined_call_operand.vmem [shape: f32[1,64], index: 8, kind: input, shape index: {}]
  %s9 = inlined_call_operand.vmem [shape: f32[64,64], index: 9, kind: output, shape index: {0}]
  %s10 = inlined_call_operand.vmem [shape: f32[64,64], index: 10, kind: output, shape index: {1}]
  %11 = xla_tuple %s9, %s10
  %s12 = sld [smem:[#allocation0]]
  $region54: #{encoder_birnn_forward.1} parent=0
    _
  %s14 = ssub.s32 1, %s12
  %s15 = scalar_select 0, %s14, %s12
  // Predicated region
  $region2: #{encoder_birnn_forward.1} parent=0 // pred_check
    _
  $region3: #{encoder_birnn_forward.1} parent=0 // pred_check_branch
    %17 = sbr.rel (0) target = $region5
  $region4: #{encoder_birnn_forward.1} parent=0 // pred_region
    _
  $region5: #{encoder_birnn_forward.1} parent=0 // pred_fallthru
    _
  // Predicated region
  $region6: #{encoder_birnn_forward.1} parent=0 // pred_check
    _
  $region7: #{encoder_birnn_forward.1} parent=0 // pred_check_branch
    %19 = sbr.rel (0) target = $region9
  $region8: #{encoder_birnn_forward.1} parent=0 // pred_region
    _
  $region9: #{encoder_birnn_forward.1} parent=0 // pred_fallthru
    _
  // Predicated region
  $region10: #{encoder_birnn_forward.1} parent=0 // pred_check
    _
  $region11: #{encoder_birnn_forward.1} parent=0 // pred_check_branch
    %21 = sbr.rel (0) target = $region13
  $region12: #{encoder_birnn_forward.1} parent=0 // pred_region
    _
  $region13: #{encoder_birnn_forward.1} parent=0 // pred_fallthru
    _
  // Predicated region
  $region14: #{encoder_birnn_forward.1} parent=0 // pred_check
    _
  $region15: #{encoder_birnn_forward.1} parent=0 // pred_check_branch
    %23 = sbr.rel (0) target = $region17
  $region16: #{encoder_birnn_forward.1} parent=0 // pred_region
    _
  $region17: #{encoder_birnn_forward.1} parent=0 // pred_fallthru
    _
  // Predicated region
  $region18: #{encoder_birnn_forward.1} parent=0 // pred_check
    _
  $region19: #{encoder_birnn_forward.1} parent=0 // pred_check_branch
    %25 = sbr.rel (0) target = $region21
  $region20: #{encoder_birnn_forward.1} parent=0 // pred_region
    _
  $region21: #{encoder_birnn_forward.1} parent=0 // pred_fallthru
    _
  // Predicated region
  $region22: #{encoder_birnn_forward.1} parent=0 // pred_check
    _
  $region23: #{encoder_birnn_forward.1} parent=0 // pred_check_branch
    %27 = sbr.rel (0) target = $region25
  $region24: #{encoder_birnn_forward.1} parent=0 // pred_region
    _
  $region25: #{encoder_birnn_forward.1} parent=0 // pred_fallthru
    _
  // Predicated region
  $region26: #{encoder_birnn_forward.1} parent=0 // pred_check
    _
  $region27: #{encoder_birnn_forward.1} parent=0 // pred_check_branch
    %29 = sbr.rel (0) target = $region29
  $region28: #{encoder_birnn_forward.1} parent=0 // pred_region
    _
  $region29: #{encoder_birnn_forward.1} parent=0 // pred_fallthru
    _
  // Predicated region
  $region30: #{encoder_birnn_forward.1} parent=0 // pred_check
    _
  $region31: #{encoder_birnn_forward.1} parent=0 // pred_check_branch
    %31 = sbr.rel (0) target = $region33
  $region32: #{encoder_birnn_forward.1} parent=0 // pred_region
    _
  $region33: #{encoder_birnn_forward.1} parent=0 // pred_fallthru
    _
  // Predicated region
  $region34: #{encoder_birnn_forward.1} parent=0 // pred_check
    _
  $region35: #{encoder_birnn_forward.1} parent=0 // pred_check_branch
    %33 = sbr.rel (0) target = $region37
  $region36: #{encoder_birnn_forward.1} parent=0 // pred_region
    _
  $region37: #{encoder_birnn_forward.1} parent=0 // pred_fallthru
    _
  %v35 = vld [vmem:[%s0] sm:$0xf]
  %v36 = vld [vmem:[%s0 + $0x4] sm:$0xf]
  %v37 = vld [vmem:[%s0 + $0x8] sm:$0xf]
  %v38 = vld [vmem:[%s0 + $0xc] sm:$0xf]
  %v39 = vld [vmem:[%s0 + $0x10] sm:$0xf]
  %v40 = vld [vmem:[%s0 + $0x14] sm:$0xf]
  %v41 = vld [vmem:[%s0 + $0x18] sm:$0xf]
  %v42 = vld [vmem:[%s0 + $0x1c] sm:$0xf]
  %v43 = vld [vmem:[%s1] sm:$0xff]
  %v44 = vld [vmem:[%s1 + $0x8] sm:$0xff]
  %v45 = vld [vmem:[%s2] sm:$0x3]
  %v47 = vlaneseq
  %v48 = vshrl.u32 %v47, 7
  %v49 = vsub.s32 0, %v48
  %v50 = vrot.slane %v45, %v49
  %v51 = vlaneseq
  %v52 = vshrl.u32 %v51, 7
  %v53 = vsub.s32 1, %v52
  %v54 = vrot.slane %v45, %v53
  %v65 = vunpack.c.l.b16 %v35
  %v66 = vunpack.c.l.b16 %v36
  %v67 = vunpack.c.l.b16 %v37
  %v68 = vunpack.c.l.b16 %v38
  %v69 = vunpack.c.l.b16 %v39
  %v70 = vunpack.c.l.b16 %v40
  %v71 = vunpack.c.l.b16 %v41
  %v72 = vunpack.c.l.b16 %v42
  %v73 = vpack.c.b16 %v66, %v65
  %v74 = vpack.c.b16 %v68, %v67
  %v75 = vpack.c.b16 %v70, %v69
  %v76 = vpack.c.b16 %v72, %v71
  %v79 = vunpack.c.l.b16 %v43
  %v80 = vunpack.c.h.b16 %v43
  %v81 = vunpack.c.l.b16 %v44
  %v82 = vunpack.c.h.b16 %v44
  %v83 = vpack.c.b16 %v81, %v79
  %v84 = vpack.c.b16 %v82, %v80
  %vm87 = vcmask 130048
  %v89 = vsel %vm87, %v73, 0
  %v92 = vsel %vm87, %v74, 0
  %v95 = vsel %vm87, %v75, 0
  %v98 = vsel %vm87, %v76, 0
  %100 = vmatprep.subr.bf16.mxu0 0
  %101 = vmatpush1.bf16.msra.mxu0 0
  %102 = vmatprep.subr.bf16.mxu0 0
  %103 = vmatpush1.bf16.msra.mxu0 0
  %104 = vmatprep.subr.bf16.mxu0 0
  %105 = vmatpush1.bf16.msra.mxu0 0
  %106 = vmatprep.subr.bf16.mxu0 0
  %107 = vmatpush1.bf16.msra.mxu0 0
  %108 = vmatprep.subr.bf16.mxu0 0
  %109 = vmatpush1.bf16.msra.mxu0 0
  %110 = vmatprep.subr.bf16.mxu0 0
  %111 = vmatpush1.bf16.msra.mxu0 0
  %112 = vmatprep.subr.bf16.mxu0 0
  %113 = vmatpush1.bf16.msra.mxu0 0
  %114 = vmatprep.subr.bf16.mxu0 %v84
  %115 = vmatpush1.bf16.msra.mxu0 %v83
  %116 = vmatprep.subr.bf16.mxu0 0
  %117 = vmatpush2.bf16.msra.mxu0 0
  %118 = vmatprep.subr.bf16.mxu0 0
  %119 = vmatpush2.bf16.msra.mxu0 0
  %120 = vmatprep.subr.bf16.mxu0 0
  %121 = vmatpush2.bf16.msra.mxu0 0
  %122 = vmatprep.subr.bf16.mxu0 0
  %123 = vmatpush2.bf16.msra.mxu0 0
  %124 = vmatprep.subr.bf16.mxu0 0
  %125 = vmatpush2.bf16.msra.mxu0 0
  %126 = vmatprep.subr.bf16.mxu0 0
  %127 = vmatpush2.bf16.msra.mxu0 0
  %128 = vmatprep.subr.bf16.mxu0 0
  %129 = vmatpush2.bf16.msra.mxu0 0
  %130 = vmatprep.subr.bf16.mxu0 0
  %131 = vmatpush2.bf16.msra.mxu0 0
  %132 = vmatprep.mubr.bf16.mxu0 0
  %133 = vmatmul.mubr.bf16.gmra.mxu0 %v89
  %v134 = vpop.f32.mrf.mxu0
  %v135 = vadd.f32 %v50, %v134
  %v136 = vpop.f32.mrf.mxu0
  %v137 = vadd.f32 %v54, %v136
  %v138 = vpop.f32.mrf.mxu0
  %v139 = vadd.f32 %v50, %v138
  %v140 = vpop.f32.mrf.mxu0
  %v141 = vadd.f32 %v54, %v140
  %142 = vmatprep.mubr.bf16.mxu0 0
  %143 = vmatmul.mubr.bf16.gmra.mxu0 %v92
  %v144 = vpop.f32.mrf.mxu0
  %v145 = vadd.f32 %v50, %v144
  %v146 = vpop.f32.mrf.mxu0
  %v147 = vadd.f32 %v54, %v146
  %v148 = vpop.f32.mrf.mxu0
  %v149 = vadd.f32 %v50, %v148
  %v150 = vpop.f32.mrf.mxu0
  %v151 = vadd.f32 %v54, %v150
  %152 = vmatprep.mubr.bf16.mxu0 0
  %153 = vmatmul.mubr.bf16.gmra.mxu0 %v95
  %v154 = vpop.f32.mrf.mxu0
  %v155 = vadd.f32 %v50, %v154
  %v156 = vpop.f32.mrf.mxu0
  %v157 = vadd.f32 %v54, %v156
  %v158 = vpop.f32.mrf.mxu0
  %v159 = vadd.f32 %v50, %v158
  %v160 = vpop.f32.mrf.mxu0
  %v161 = vadd.f32 %v54, %v160
  %162 = vmatprep.mubr.bf16.mxu0 0
  %163 = vmatmul.mubr.bf16.gmra.mxu0 %v98
  %v164 = vpop.f32.mrf.mxu0
  %v165 = vadd.f32 %v50, %v164
  %v166 = vpop.f32.mrf.mxu0
  %v167 = vadd.f32 %v54, %v166
  %v168 = vpop.f32.mrf.mxu0
  %v169 = vadd.f32 %v50, %v168
  %v170 = vpop.f32.mrf.mxu0
  %v171 = vadd.f32 %v54, %v170
  %172 = vdwg.mxu0
  %173 = vst [vmem:[#allocation2] sm:$0xff] %v135
  %vm174 = vcmask 523264
  %175 = vst.msk [vmem:[#allocation2 + $0x8] sm:$0xff] %vm174, %v137
  %176 = vst [vmem:[#allocation2 + $0x10] sm:$0xff] %v139
  %177 = vst.msk [vmem:[#allocation2 + $0x18] sm:$0xff] %vm174, %v141
  %178 = vst [vmem:[#allocation2 + $0x20] sm:$0xff] %v145
  %179 = vst.msk [vmem:[#allocation2 + $0x28] sm:$0xff] %vm174, %v147
  %180 = vst [vmem:[#allocation2 + $0x30] sm:$0xff] %v149
  %181 = vst.msk [vmem:[#allocation2 + $0x38] sm:$0xff] %vm174, %v151
  %182 = vst [vmem:[#allocation2 + $0x40] sm:$0xff] %v155
  %183 = vst.msk [vmem:[#allocation2 + $0x48] sm:$0xff] %vm174, %v157
  %184 = vst [vmem:[#allocation2 + $0x50] sm:$0xff] %v159
  %185 = vst.msk [vmem:[#allocation2 + $0x58] sm:$0xff] %vm174, %v161
  %186 = vst [vmem:[#allocation2 + $0x60] sm:$0xff] %v165
  %187 = vst.msk [vmem:[#allocation2 + $0x68] sm:$0xff] %vm174, %v167
  %188 = vst [vmem:[#allocation2 + $0x70] sm:$0xff] %v169
  %189 = vst.msk [vmem:[#allocation2 + $0x78] sm:$0xff] %vm174, %v171
  %v190 = vld [vmem:[%s3] sm:$0xff]
  %v191 = vld [vmem:[%s3 + $0x8] sm:$0xff]
  %v192 = vld [vmem:[%s3 + $0x10] sm:$0xff]
  %v193 = vld [vmem:[%s3 + $0x18] sm:$0xff]
  %v194 = vld [vmem:[%s3 + $0x20] sm:$0xff]
  %v195 = vld [vmem:[%s3 + $0x28] sm:$0xff]
  %v196 = vld [vmem:[%s3 + $0x30] sm:$0xff]
  %v197 = vld [vmem:[%s3 + $0x38] sm:$0xff]
  %v198 = vld [vmem:[%s4] sm:$0x1]
  %v200 = vlaneseq
  %v201 = vshrl.u32 %v200, 7
  %v202 = vsub.s32 0, %v201
  %v203 = vrot.slane %v198, %v202
  %s205 = smul.u32 0, 2
  %s206 = smul.addr %s205, 8
  %s207 = scalar_lea.vmem [#allocation2], %s206
  %v208 = vld [vmem:[%s207] sm:$0xff]
  %v209 = vld [vmem:[%s207 + $0x8] sm:$0xff]
  %v218 = vunpack.c.l.b16 %v190
  %v219 = vunpack.c.h.b16 %v190
  %v220 = vunpack.c.l.b16 %v191
  %v221 = vunpack.c.h.b16 %v191
  %v222 = vunpack.c.l.b16 %v192
  %v223 = vunpack.c.h.b16 %v192
  %v224 = vunpack.c.l.b16 %v193
  %v225 = vunpack.c.h.b16 %v193
  %v226 = vunpack.c.l.b16 %v194
  %v227 = vunpack.c.h.b16 %v194
  %v228 = vunpack.c.l.b16 %v195
  %v229 = vunpack.c.h.b16 %v195
  %v230 = vunpack.c.l.b16 %v196
  %v231 = vunpack.c.h.b16 %v196
  %v232 = vunpack.c.l.b16 %v197
  %v233 = vunpack.c.h.b16 %v197
  %v234 = vpack.c.b16 %v220, %v218
  %v235 = vpack.c.b16 %v221, %v219
  %v236 = vpack.c.b16 %v224, %v222
  %v237 = vpack.c.b16 %v225, %v223
  %v238 = vpack.c.b16 %v228, %v226
  %v239 = vpack.c.b16 %v229, %v227
  %v240 = vpack.c.b16 %v232, %v230
  %v241 = vpack.c.b16 %v233, %v231
  %v251 = vsel %vm174, 0, 0
  %253 = vmatprep.subr.bf16.mxu0 0
  %254 = vmatpush1.bf16.msra.mxu0 0
  %255 = vmatprep.subr.bf16.mxu0 0
  %256 = vmatpush1.bf16.msra.mxu0 0
  %257 = vmatprep.subr.bf16.mxu0 0
  %258 = vmatpush1.bf16.msra.mxu0 0
  %259 = vmatprep.subr.bf16.mxu0 0
  %260 = vmatpush1.bf16.msra.mxu0 0
  %261 = vmatprep.subr.bf16.mxu0 %v241
  %262 = vmatpush1.bf16.msra.mxu0 %v240
  %263 = vmatprep.subr.bf16.mxu0 %v239
  %264 = vmatpush1.bf16.msra.mxu0 %v238
  %265 = vmatprep.subr.bf16.mxu0 %v237
  %266 = vmatpush1.bf16.msra.mxu0 %v236
  %267 = vmatprep.subr.bf16.mxu0 %v235
  %268 = vmatpush1.bf16.msra.mxu0 %v234
  %269 = vmatprep.subr.bf16.mxu0 0
  %270 = vmatpush2.bf16.msra.mxu0 0
  %271 = vmatprep.subr.bf16.mxu0 0
  %272 = vmatpush2.bf16.msra.mxu0 0
  %273 = vmatprep.subr.bf16.mxu0 0
  %274 = vmatpush2.bf16.msra.mxu0 0
  %275 = vmatprep.subr.bf16.mxu0 0
  %276 = vmatpush2.bf16.msra.mxu0 0
  %277 = vmatprep.subr.bf16.mxu0 0
  %278 = vmatpush2.bf16.msra.mxu0 0
  %279 = vmatprep.subr.bf16.mxu0 0
  %280 = vmatpush2.bf16.msra.mxu0 0
  %281 = vmatprep.subr.bf16.mxu0 0
  %282 = vmatpush2.bf16.msra.mxu0 0
  %283 = vmatprep.subr.bf16.mxu0 0
  %284 = vmatpush2.bf16.msra.mxu0 0
  %285 = vmatprep.mubr.bf16.mxu0 0
  %286 = vmatmul.mubr.bf16.gmra.mxu0 %v251
  %v287 = vpop.f32.mrf.mxu0
  %v288 = vadd.f32 0.0, %v287
  %v289 = vpop.f32.mrf.mxu0
  %v290 = vadd.f32 0.0, %v289
  %v291 = vpop.f32.mrf.mxu0
  %v292 = vpop.f32.mrf.mxu0
  %293 = vdwg.mxu0
  %v294 = vadd.f32 %v208, %v288
  %v295 = vxor.u32 %v294, 2147483648
  %v296 = vmul.f32 %v295, 1.442695
  %v297 = vpow.pop %v296
  %v298 = vadd.f32 %v297, 1.0
  %v299 = vrcp.pop %v298
  %v300 = vmul.f32 1.0, %v299
  %v301 = vadd.f32 %v290, %v203
  %v302 = vmul.f32 %v300, %v301
  %v303 = vadd.f32 %v209, %v302
  %v304 = vtanh.pop %v303
  %v305 = vsub.f32 1.0, %v300
  %307 = vrot.lane.b32.xlu0 %v304, 64
  %v308 = vpop.permute.xlu0 %307
  %v310 = vmul.f32 %v305, %v308
  %v311 = vmul.f32 %v300, 0.0
  %v312 = vadd.f32 %v310, %v311
  %314 = vrot.lane.b32.xlu0 %v312, 64
  %v315 = vpop.permute.xlu0 %314
  %317 = vst.msk [vmem:[%s9] sm:$0xff] %vm174, %v315
  %s318 = smul.u32 1, 2
  %s319 = smul.addr %s318, 8
  %s320 = scalar_lea.vmem [#allocation2], %s319
  %v321 = vld [vmem:[%s320] sm:$0xff]
  %v322 = vld [vmem:[%s320 + $0x8] sm:$0xff]
  %v323 = vpack.c.bf16 %v312, %v312
  %325 = vrot.lane.b32.xlu0 %v323, 64
  %v326 = vpop.permute.xlu0 %325
  %v328 = vsel %vm174, %v326, 0
  %330 = vmatprep.subr.bf16.mxu0 0
  %331 = vmatpush1.bf16.msra.mxu0 0
  %332 = vmatprep.subr.bf16.mxu0 0
  %333 = vmatpush1.bf16.msra.mxu0 0
  %334 = vmatprep.subr.bf16.mxu0 0
  %335 = vmatpush1.bf16.msra.mxu0 0
  %336 = vmatprep.subr.bf16.mxu0 0
  %337 = vmatpush1.bf16.msra.mxu0 0
  %338 = vmatprep.subr.bf16.mxu0 %v241
  %339 = vmatpush1.bf16.msra.mxu0 %v240
  %340 = vmatprep.subr.bf16.mxu0 %v239
  %341 = vmatpush1.bf16.msra.mxu0 %v238
  %342 = vmatprep.subr.bf16.mxu0 %v237
  %343 = vmatpush1.bf16.msra.mxu0 %v236
  %344 = vmatprep.subr.bf16.mxu0 %v235
  %345 = vmatpush1.bf16.msra.mxu0 %v234
  %346 = vmatprep.subr.bf16.mxu0 0
  %347 = vmatpush2.bf16.msra.mxu0 0
  %348 = vmatprep.subr.bf16.mxu0 0
  %349 = vmatpush2.bf16.msra.mxu0 0
  %350 = vmatprep.subr.bf16.mxu0 0
  %351 = vmatpush2.bf16.msra.mxu0 0
  %352 = vmatprep.subr.bf16.mxu0 0
  %353 = vmatpush2.bf16.msra.mxu0 0
  %354 = vmatprep.subr.bf16.mxu0 0
  %355 = vmatpush2.bf16.msra.mxu0 0
  %356 = vmatprep.subr.bf16.mxu0 0
  %357 = vmatpush2.bf16.msra.mxu0 0
  %358 = vmatprep.subr.bf16.mxu0 0
  %359 = vmatpush2.bf16.msra.mxu0 0
  %360 = vmatprep.subr.bf16.mxu0 0
  %361 = vmatpush2.bf16.msra.mxu0 0
  %362 = vmatprep.mubr.bf16.mxu0 0
  %363 = vmatmul.mubr.bf16.gmra.mxu0 %v328
  %v364 = vpop.f32.mrf.mxu0
  %v365 = vadd.f32 0.0, %v364
  %v366 = vpop.f32.mrf.mxu0
  %v367 = vadd.f32 0.0, %v366
  %v368 = vpop.f32.mrf.mxu0
  %v369 = vpop.f32.mrf.mxu0
  %370 = vdwg.mxu0
  %v371 = vadd.f32 %v321, %v365
  %v372 = vxor.u32 %v371, 2147483648
  %v373 = vmul.f32 %v372, 1.442695
  %v374 = vpow.pop %v373
  %v375 = vadd.f32 %v374, 1.0
  %v376 = vrcp.pop %v375
  %v377 = vmul.f32 1.0, %v376
  %v378 = vadd.f32 %v367, %v203
  %v379 = vmul.f32 %v377, %v378
  %v380 = vadd.f32 %v322, %v379
  %v381 = vtanh.pop %v380
  %v382 = vsub.f32 1.0, %v377
  %384 = vrot.lane.b32.xlu0 %v381, 64
  %v385 = vpop.permute.xlu0 %384
  %v387 = vmul.f32 %v382, %v385
  %v388 = vmul.f32 %v377, %v312
  %v389 = vadd.f32 %v387, %v388
  %391 = vrot.lane.b32.xlu0 %v389, 64
  %v392 = vpop.permute.xlu0 %391
  %s394 = scalar_lea.vmem %s9, 8
  %395 = vst.msk [vmem:[%s394] sm:$0xff] %vm174, %v392
  %s396 = smul.u32 2, 2
  %s397 = smul.addr %s396, 8
  %s398 = scalar_lea.vmem [#allocation2], %s397
  %v399 = vld [vmem:[%s398] sm:$0xff]
  %v400 = vld [vmem:[%s398 + $0x8] sm:$0xff]
  %v401 = vpack.c.bf16 %v389, %v389
  %403 = vrot.lane.b32.xlu0 %v401, 64
  %v404 = vpop.permute.xlu0 %403
  %v406 = vsel %vm174, %v404, 0
  %408 = vmatprep.subr.bf16.mxu0 0
  %409 = vmatpush1.bf16.msra.mxu0 0
  %410 = vmatprep.subr.bf16.mxu0 0
  %411 = vmatpush1.bf16.msra.mxu0 0
  %412 = vmatprep.subr.bf16.mxu0 0
  %413 = vmatpush1.bf16.msra.mxu0 0
  %414 = vmatprep.subr.bf16.mxu0 0
  %415 = vmatpush1.bf16.msra.mxu0 0
  %416 = vmatprep.subr.bf16.mxu0 %v241
  %417 = vmatpush1.bf16.msra.mxu0 %v240
  %418 = vmatprep.subr.bf16.mxu0 %v239
  %419 = vmatpush1.bf16.msra.mxu0 %v238
  %420 = vmatprep.subr.bf16.mxu0 %v237
  %421 = vmatpush1.bf16.msra.mxu0 %v236
  %422 = vmatprep.subr.bf16.mxu0 %v235
  %423 = vmatpush1.bf16.msra.mxu0 %v234
  %424 = vmatprep.subr.bf16.mxu0 0
  %425 = vmatpush2.bf16.msra.mxu0 0
  %426 = vmatprep.subr.bf16.mxu0 0
  %427 = vmatpush2.bf16.msra.mxu0 0
  %428 = vmatprep.subr.bf16.mxu0 0
  %429 = vmatpush2.bf16.msra.mxu0 0
  %430 = vmatprep.subr.bf16.mxu0 0
  %431 = vmatpush2.bf16.msra.mxu0 0
  %432 = vmatprep.subr.bf16.mxu0 0
  %433 = vmatpush2.bf16.msra.mxu0 0
  %434 = vmatprep.subr.bf16.mxu0 0
  %435 = vmatpush2.bf16.msra.mxu0 0
  %436 = vmatprep.subr.bf16.mxu0 0
  %437 = vmatpush2.bf16.msra.mxu0 0
  %438 = vmatprep.subr.bf16.mxu0 0
  %439 = vmatpush2.bf16.msra.mxu0 0
  %440 = vmatprep.mubr.bf16.mxu0 0
  %441 = vmatmul.mubr.bf16.gmra.mxu0 %v406
  %v442 = vpop.f32.mrf.mxu0
  %v443 = vadd.f32 0.0, %v442
  %v444 = vpop.f32.mrf.mxu0
  %v445 = vadd.f32 0.0, %v444
  %v446 = vpop.f32.mrf.mxu0
  %v447 = vpop.f32.mrf.mxu0
  %448 = vdwg.mxu0
  %v449 = vadd.f32 %v399, %v443
  %v450 = vxor.u32 %v449, 2147483648
  %v451 = vmul.f32 %v450, 1.442695
  %v452 = vpow.pop %v451
  %v453 = vadd.f32 %v452, 1.0
  %v454 = vrcp.pop %v453
  %v455 = vmul.f32 1.0, %v454
  %v456 = vadd.f32 %v445, %v203
  %v457 = vmul.f32 %v455, %v456
  %v458 = vadd.f32 %v400, %v457
  %v459 = vtanh.pop %v458
  %v460 = vsub.f32 1.0, %v455
  %462 = vrot.lane.b32.xlu0 %v459, 64
  %v463 = vpop.permute.xlu0 %462
  %v465 = vmul.f32 %v460, %v463
  %v466 = vmul.f32 %v455, %v389
  %v467 = vadd.f32 %v465, %v466
  %469 = vrot.lane.b32.xlu0 %v467, 64
  %v470 = vpop.permute.xlu0 %469
  %s472 = scalar_lea.vmem %s9, 16
  %473 = vst.msk [vmem:[%s472] sm:$0xff] %vm174, %v470
  %s474 = smul.u32 3, 2
  %s475 = smul.addr %s474, 8
  %s476 = scalar_lea.vmem [#allocation2], %s475
  %v477 = vld [vmem:[%s476] sm:$0xff]
  %v478 = vld [vmem:[%s476 + $0x8] sm:$0xff]
  %v479 = vpack.c.bf16 %v467, %v467
  %481 = vrot.lane.b32.xlu0 %v479, 64
  %v482 = vpop.permute.xlu0 %481
  %v484 = vsel %vm174, %v482, 0
  %486 = vmatprep.subr.bf16.mxu0 0
  %487 = vmatpush1.bf16.msra.mxu0 0
  %488 = vmatprep.subr.bf16.mxu0 0
  %489 = vmatpush1.bf16.msra.mxu0 0
  %490 = vmatprep.subr.bf16.mxu0 0
  %491 = vmatpush1.bf16.msra.mxu0 0
  %492 = vmatprep.subr.bf16.mxu0 0
  %493 = vmatpush1.bf16.msra.mxu0 0
  %494 = vmatprep.subr.bf16.mxu0 %v241
  %495 = vmatpush1.bf16.msra.mxu0 %v240
  %496 = vmatprep.subr.bf16.mxu0 %v239
  %497 = vmatpush1.bf16.msra.mxu0 %v238
  %498 = vmatprep.subr.bf16.mxu0 %v237
  %499 = vmatpush1.bf16.msra.mxu0 %v236
  %500 = vmatprep.subr.bf16.mxu0 %v235
  %501 = vmatpush1.bf16.msra.mxu0 %v234
  %502 = vmatprep.subr.bf16.mxu0 0
  %503 = vmatpush2.bf16.msra.mxu0 0
  %504 = vmatprep.subr.bf16.mxu0 0
  %505 = vmatpush2.bf16.msra.mxu0 0
  %506 = vmatprep.subr.bf16.mxu0 0
  %507 = vmatpush2.bf16.msra.mxu0 0
  %508 = vmatprep.subr.bf16.mxu0 0
  %509 = vmatpush2.bf16.msra.mxu0 0
  %510 = vmatprep.subr.bf16.mxu0 0
  %511 = vmatpush2.bf16.msra.mxu0 0
  %512 = vmatprep.subr.bf16.mxu0 0
  %513 = vmatpush2.bf16.msra.mxu0 0
  %514 = vmatprep.subr.bf16.mxu0 0
  %515 = vmatpush2.bf16.msra.mxu0 0
  %516 = vmatprep.subr.bf16.mxu0 0
  %517 = vmatpush2.bf16.msra.mxu0 0
  %518 = vmatprep.mubr.bf16.mxu0 0
  %519 = vmatmul.mubr.bf16.gmra.mxu0 %v484
  %v520 = vpop.f32.mrf.mxu0
  %v521 = vadd.f32 0.0, %v520
  %v522 = vpop.f32.mrf.mxu0
  %v523 = vadd.f32 0.0, %v522
  %v524 = vpop.f32.mrf.mxu0
  %v525 = vpop.f32.mrf.mxu0
  %526 = vdwg.mxu0
  %v527 = vadd.f32 %v477, %v521
  %v528 = vxor.u32 %v527, 2147483648
  %v529 = vmul.f32 %v528, 1.442695
  %v530 = vpow.pop %v529
  %v531 = vadd.f32 %v530, 1.0
  %v532 = vrcp.pop %v531
  %v533 = vmul.f32 1.0, %v532
  %v534 = vadd.f32 %v523, %v203
  %v535 = vmul.f32 %v533, %v534
  %v536 = vadd.f32 %v478, %v535
  %v537 = vtanh.pop %v536
  %v538 = vsub.f32 1.0, %v533
  %540 = vrot.lane.b32.xlu0 %v537, 64
  %v541 = vpop.permute.xlu0 %540
  %v543 = vmul.f32 %v538, %v541
  %v544 = vmul.f32 %v533, %v467
  %v545 = vadd.f32 %v543, %v544
  %547 = vrot.lane.b32.xlu0 %v545, 64
  %v548 = vpop.permute.xlu0 %547
  %s550 = scalar_lea.vmem %s9, 24
  %551 = vst.msk [vmem:[%s550] sm:$0xff] %vm174, %v548
  %s552 = smul.u32 4, 2
  %s553 = smul.addr %s552, 8
  %s554 = scalar_lea.vmem [#allocation2], %s553
  %v555 = vld [vmem:[%s554] sm:$0xff]
  %v556 = vld [vmem:[%s554 + $0x8] sm:$0xff]
  %v557 = vpack.c.bf16 %v545, %v545
  %559 = vrot.lane.b32.xlu0 %v557, 64
  %v560 = vpop.permute.xlu0 %559
  %v562 = vsel %vm174, %v560, 0
  %564 = vmatprep.subr.bf16.mxu0 0
  %565 = vmatpush1.bf16.msra.mxu0 0
  %566 = vmatprep.subr.bf16.mxu0 0
  %567 = vmatpush1.bf16.msra.mxu0 0
  %568 = vmatprep.subr.bf16.mxu0 0
  %569 = vmatpush1.bf16.msra.mxu0 0
  %570 = vmatprep.subr.bf16.mxu0 0
  %571 = vmatpush1.bf16.msra.mxu0 0
  %572 = vmatprep.subr.bf16.mxu0 %v241
  %573 = vmatpush1.bf16.msra.mxu0 %v240
  %574 = vmatprep.subr.bf16.mxu0 %v239
  %575 = vmatpush1.bf16.msra.mxu0 %v238
  %576 = vmatprep.subr.bf16.mxu0 %v237
  %577 = vmatpush1.bf16.msra.mxu0 %v236
  %578 = vmatprep.subr.bf16.mxu0 %v235
  %579 = vmatpush1.bf16.msra.mxu0 %v234
  %580 = vmatprep.subr.bf16.mxu0 0
  %581 = vmatpush2.bf16.msra.mxu0 0
  %582 = vmatprep.subr.bf16.mxu0 0
  %583 = vmatpush2.bf16.msra.mxu0 0
  %584 = vmatprep.subr.bf16.mxu0 0
  %585 = vmatpush2.bf16.msra.mxu0 0
  %586 = vmatprep.subr.bf16.mxu0 0
  %587 = vmatpush2.bf16.msra.mxu0 0
  %588 = vmatprep.subr.bf16.mxu0 0
  %589 = vmatpush2.bf16.msra.mxu0 0
  %590 = vmatprep.subr.bf16.mxu0 0
  %591 = vmatpush2.bf16.msra.mxu0 0
  %592 = vmatprep.subr.bf16.mxu0 0
  %593 = vmatpush2.bf16.msra.mxu0 0
  %594 = vmatprep.subr.bf16.mxu0 0
  %595 = vmatpush2.bf16.msra.mxu0 0
  %596 = vmatprep.mubr.bf16.mxu0 0
  %597 = vmatmul.mubr.bf16.gmra.mxu0 %v562
  %v598 = vpop.f32.mrf.mxu0
  %v599 = vadd.f32 0.0, %v598
  %v600 = vpop.f32.mrf.mxu0
  %v601 = vadd.f32 0.0, %v600
  %v602 = vpop.f32.mrf.mxu0
  %v603 = vpop.f32.mrf.mxu0
  %604 = vdwg.mxu0
  %v605 = vadd.f32 %v555, %v599
  %v606 = vxor.u32 %v605, 2147483648
  %v607 = vmul.f32 %v606, 1.442695
  %v608 = vpow.pop %v607
  %v609 = vadd.f32 %v608, 1.0
  %v610 = vrcp.pop %v609
  %v611 = vmul.f32 1.0, %v610
  %v612 = vadd.f32 %v601, %v203
  %v613 = vmul.f32 %v611, %v612
  %v614 = vadd.f32 %v556, %v613
  %v615 = vtanh.pop %v614
  %v616 = vsub.f32 1.0, %v611
  %618 = vrot.lane.b32.xlu0 %v615, 64
  %v619 = vpop.permute.xlu0 %618
  %v621 = vmul.f32 %v616, %v619
  %v622 = vmul.f32 %v611, %v545
  %v623 = vadd.f32 %v621, %v622
  %625 = vrot.lane.b32.xlu0 %v623, 64
  %v626 = vpop.permute.xlu0 %625
  %s628 = scalar_lea.vmem %s9, 32
  %629 = vst.msk [vmem:[%s628] sm:$0xff] %vm174, %v626
  %s630 = smul.u32 5, 2
  %s631 = smul.addr %s630, 8
  %s632 = scalar_lea.vmem [#allocation2], %s631
  %v633 = vld [vmem:[%s632] sm:$0xff]
  %v634 = vld [vmem:[%s632 + $0x8] sm:$0xff]
  %v635 = vpack.c.bf16 %v623, %v623
  %637 = vrot.lane.b32.xlu0 %v635, 64
  %v638 = vpop.permute.xlu0 %637
  %v640 = vsel %vm174, %v638, 0
  %642 = vmatprep.subr.bf16.mxu0 0
  %643 = vmatpush1.bf16.msra.mxu0 0
  %644 = vmatprep.subr.bf16.mxu0 0
  %645 = vmatpush1.bf16.msra.mxu0 0
  %646 = vmatprep.subr.bf16.mxu0 0
  %647 = vmatpush1.bf16.msra.mxu0 0
  %648 = vmatprep.subr.bf16.mxu0 0
  %649 = vmatpush1.bf16.msra.mxu0 0
  %650 = vmatprep.subr.bf16.mxu0 %v241
  %651 = vmatpush1.bf16.msra.mxu0 %v240
  %652 = vmatprep.subr.bf16.mxu0 %v239
  %653 = vmatpush1.bf16.msra.mxu0 %v238
  %654 = vmatprep.subr.bf16.mxu0 %v237
  %655 = vmatpush1.bf16.msra.mxu0 %v236
  %656 = vmatprep.subr.bf16.mxu0 %v235
  %657 = vmatpush1.bf16.msra.mxu0 %v234
  %658 = vmatprep.subr.bf16.mxu0 0
  %659 = vmatpush2.bf16.msra.mxu0 0
  %660 = vmatprep.subr.bf16.mxu0 0
  %661 = vmatpush2.bf16.msra.mxu0 0
  %662 = vmatprep.subr.bf16.mxu0 0
  %663 = vmatpush2.bf16.msra.mxu0 0
  %664 = vmatprep.subr.bf16.mxu0 0
  %665 = vmatpush2.bf16.msra.mxu0 0
  %666 = vmatprep.subr.bf16.mxu0 0
  %667 = vmatpush2.bf16.msra.mxu0 0
  %668 = vmatprep.subr.bf16.mxu0 0
  %669 = vmatpush2.bf16.msra.mxu0 0
  %670 = vmatprep.subr.bf16.mxu0 0
  %671 = vmatpush2.bf16.msra.mxu0 0
  %672 = vmatprep.subr.bf16.mxu0 0
  %673 = vmatpush2.bf16.msra.mxu0 0
  %674 = vmatprep.mubr.bf16.mxu0 0
  %675 = vmatmul.mubr.bf16.gmra.mxu0 %v640
  %v676 = vpop.f32.mrf.mxu0
  %v677 = vadd.f32 0.0, %v676
  %v678 = vpop.f32.mrf.mxu0
  %v679 = vadd.f32 0.0, %v678
  %v680 = vpop.f32.mrf.mxu0
  %v681 = vpop.f32.mrf.mxu0
  %682 = vdwg.mxu0
  %v683 = vadd.f32 %v633, %v677
  %v684 = vxor.u32 %v683, 2147483648
  %v685 = vmul.f32 %v684, 1.442695
  %v686 = vpow.pop %v685
  %v687 = vadd.f32 %v686, 1.0
  %v688 = vrcp.pop %v687
  %v689 = vmul.f32 1.0, %v688
  %v690 = vadd.f32 %v679, %v203
  %v691 = vmul.f32 %v689, %v690
  %v692 = vadd.f32 %v634, %v691
  %v693 = vtanh.pop %v692
  %v694 = vsub.f32 1.0, %v689
  %696 = vrot.lane.b32.xlu0 %v693, 64
  %v697 = vpop.permute.xlu0 %696
  %v699 = vmul.f32 %v694, %v697
  %v700 = vmul.f32 %v689, %v623
  %v701 = vadd.f32 %v699, %v700
  %703 = vrot.lane.b32.xlu0 %v701, 64
  %v704 = vpop.permute.xlu0 %703
  %s706 = scalar_lea.vmem %s9, 40
  %707 = vst.msk [vmem:[%s706] sm:$0xff] %vm174, %v704
  %s708 = smul.u32 6, 2
  %s709 = smul.addr %s708, 8
  %s710 = scalar_lea.vmem [#allocation2], %s709
  %v711 = vld [vmem:[%s710] sm:$0xff]
  %v712 = vld [vmem:[%s710 + $0x8] sm:$0xff]
  %v713 = vpack.c.bf16 %v701, %v701
  %715 = vrot.lane.b32.xlu0 %v713, 64
  %v716 = vpop.permute.xlu0 %715
  %v718 = vsel %vm174, %v716, 0
  %720 = vmatprep.subr.bf16.mxu0 0
  %721 = vmatpush1.bf16.msra.mxu0 0
  %722 = vmatprep.subr.bf16.mxu0 0
  %723 = vmatpush1.bf16.msra.mxu0 0
  %724 = vmatprep.subr.bf16.mxu0 0
  %725 = vmatpush1.bf16.msra.mxu0 0
  %726 = vmatprep.subr.bf16.mxu0 0
  %727 = vmatpush1.bf16.msra.mxu0 0
  %728 = vmatprep.subr.bf16.mxu0 %v241
  %729 = vmatpush1.bf16.msra.mxu0 %v240
  %730 = vmatprep.subr.bf16.mxu0 %v239
  %731 = vmatpush1.bf16.msra.mxu0 %v238
  %732 = vmatprep.subr.bf16.mxu0 %v237
  %733 = vmatpush1.bf16.msra.mxu0 %v236
  %734 = vmatprep.subr.bf16.mxu0 %v235
  %735 = vmatpush1.bf16.msra.mxu0 %v234
  %736 = vmatprep.subr.bf16.mxu0 0
  %737 = vmatpush2.bf16.msra.mxu0 0
  %738 = vmatprep.subr.bf16.mxu0 0
  %739 = vmatpush2.bf16.msra.mxu0 0
  %740 = vmatprep.subr.bf16.mxu0 0
  %741 = vmatpush2.bf16.msra.mxu0 0
  %742 = vmatprep.subr.bf16.mxu0 0
  %743 = vmatpush2.bf16.msra.mxu0 0
  %744 = vmatprep.subr.bf16.mxu0 0
  %745 = vmatpush2.bf16.msra.mxu0 0
  %746 = vmatprep.subr.bf16.mxu0 0
  %747 = vmatpush2.bf16.msra.mxu0 0
  %748 = vmatprep.subr.bf16.mxu0 0
  %749 = vmatpush2.bf16.msra.mxu0 0
  %750 = vmatprep.subr.bf16.mxu0 0
  %751 = vmatpush2.bf16.msra.mxu0 0
  %752 = vmatprep.mubr.bf16.mxu0 0
  %753 = vmatmul.mubr.bf16.gmra.mxu0 %v718
  %v754 = vpop.f32.mrf.mxu0
  %v755 = vadd.f32 0.0, %v754
  %v756 = vpop.f32.mrf.mxu0
  %v757 = vadd.f32 0.0, %v756
  %v758 = vpop.f32.mrf.mxu0
  %v759 = vpop.f32.mrf.mxu0
  %760 = vdwg.mxu0
  %v761 = vadd.f32 %v711, %v755
  %v762 = vxor.u32 %v761, 2147483648
  %v763 = vmul.f32 %v762, 1.442695
  %v764 = vpow.pop %v763
  %v765 = vadd.f32 %v764, 1.0
  %v766 = vrcp.pop %v765
  %v767 = vmul.f32 1.0, %v766
  %v768 = vadd.f32 %v757, %v203
  %v769 = vmul.f32 %v767, %v768
  %v770 = vadd.f32 %v712, %v769
  %v771 = vtanh.pop %v770
  %v772 = vsub.f32 1.0, %v767
  %774 = vrot.lane.b32.xlu0 %v771, 64
  %v775 = vpop.permute.xlu0 %774
  %v777 = vmul.f32 %v772, %v775
  %v778 = vmul.f32 %v767, %v701
  %v779 = vadd.f32 %v777, %v778
  %781 = vrot.lane.b32.xlu0 %v779, 64
  %v782 = vpop.permute.xlu0 %781
  %s784 = scalar_lea.vmem %s9, 48
  %785 = vst.msk [vmem:[%s784] sm:$0xff] %vm174, %v782
  %s786 = smul.u32 7, 2
  %s787 = smul.addr %s786, 8
  %s788 = scalar_lea.vmem [#allocation2], %s787
  %v789 = vld [vmem:[%s788] sm:$0xff]
  %v790 = vld [vmem:[%s788 + $0x8] sm:$0xff]
  %v791 = vpack.c.bf16 %v779, %v779
  %793 = vrot.lane.b32.xlu0 %v791, 64
  %v794 = vpop.permute.xlu0 %793
  %v796 = vsel %vm174, %v794, 0
  %798 = vmatprep.subr.bf16.mxu0 0
  %799 = vmatpush1.bf16.msra.mxu0 0
  %800 = vmatprep.subr.bf16.mxu0 0
  %801 = vmatpush1.bf16.msra.mxu0 0
  %802 = vmatprep.subr.bf16.mxu0 0
  %803 = vmatpush1.bf16.msra.mxu0 0
  %804 = vmatprep.subr.bf16.mxu0 0
  %805 = vmatpush1.bf16.msra.mxu0 0
  %806 = vmatprep.subr.bf16.mxu0 %v241
  %807 = vmatpush1.bf16.msra.mxu0 %v240
  %808 = vmatprep.subr.bf16.mxu0 %v239
  %809 = vmatpush1.bf16.msra.mxu0 %v238
  %810 = vmatprep.subr.bf16.mxu0 %v237
  %811 = vmatpush1.bf16.msra.mxu0 %v236
  %812 = vmatprep.subr.bf16.mxu0 %v235
  %813 = vmatpush1.bf16.msra.mxu0 %v234
  %814 = vmatprep.subr.bf16.mxu0 0
  %815 = vmatpush2.bf16.msra.mxu0 0
  %816 = vmatprep.subr.bf16.mxu0 0
  %817 = vmatpush2.bf16.msra.mxu0 0
  %818 = vmatprep.subr.bf16.mxu0 0
  %819 = vmatpush2.bf16.msra.mxu0 0
  %820 = vmatprep.subr.bf16.mxu0 0
  %821 = vmatpush2.bf16.msra.mxu0 0
  %822 = vmatprep.subr.bf16.mxu0 0
  %823 = vmatpush2.bf16.msra.mxu0 0
  %824 = vmatprep.subr.bf16.mxu0 0
  %825 = vmatpush2.bf16.msra.mxu0 0
  %826 = vmatprep.subr.bf16.mxu0 0
  %827 = vmatpush2.bf16.msra.mxu0 0
  %828 = vmatprep.subr.bf16.mxu0 0
  %829 = vmatpush2.bf16.msra.mxu0 0
  %830 = vmatprep.mubr.bf16.mxu0 0
  %831 = vmatmul.mubr.bf16.gmra.mxu0 %v796
  %v832 = vpop.f32.mrf.mxu0
  %v833 = vadd.f32 0.0, %v832
  %v834 = vpop.f32.mrf.mxu0
  %v835 = vadd.f32 0.0, %v834
  %v836 = vpop.f32.mrf.mxu0
  %v837 = vpop.f32.mrf.mxu0
  %838 = vdwg.mxu0
  %v839 = vadd.f32 %v789, %v833
  %v840 = vxor.u32 %v839, 2147483648
  %v841 = vmul.f32 %v840, 1.442695
  %v842 = vpow.pop %v841
  %v843 = vadd.f32 %v842, 1.0
  %v844 = vrcp.pop %v843
  %v845 = vmul.f32 1.0, %v844
  %v846 = vadd.f32 %v835, %v203
  %v847 = vmul.f32 %v845, %v846
  %v848 = vadd.f32 %v790, %v847
  %v849 = vtanh.pop %v848
  %v850 = vsub.f32 1.0, %v845
  %852 = vrot.lane.b32.xlu0 %v849, 64
  %v853 = vpop.permute.xlu0 %852
  %v855 = vmul.f32 %v850, %v853
  %v856 = vmul.f32 %v845, %v779
  %v857 = vadd.f32 %v855, %v856
  %859 = vrot.lane.b32.xlu0 %v857, 64
  %v860 = vpop.permute.xlu0 %859
  %s862 = scalar_lea.vmem %s9, 56
  %863 = vst.msk [vmem:[%s862] sm:$0xff] %vm174, %v860
  %v864 = vld [vmem:[%s9] sm:$0xff]
  %v865 = vld [vmem:[%s9 + $0x8] sm:$0xff]
  %v866 = vld [vmem:[%s9 + $0x10] sm:$0xff]
  %v867 = vld [vmem:[%s9 + $0x18] sm:$0xff]
  %v868 = vld [vmem:[%s9 + $0x20] sm:$0xff]
  %v869 = vld [vmem:[%s9 + $0x28] sm:$0xff]
  %v870 = vld [vmem:[%s9 + $0x30] sm:$0xff]
  %v871 = vld [vmem:[%s9 + $0x38] sm:$0xff]
  %v872 = vpack.c.bf16 %v865, %v864
  %v873 = vpack.c.bf16 %v867, %v866
  %v874 = vpack.c.bf16 %v869, %v868
  %v875 = vpack.c.bf16 %v871, %v870
  %v876 = vld [vmem:[%s5] sm:$0xff]
  %v877 = vld [vmem:[%s5 + $0x8] sm:$0xff]
  %v878 = vld [vmem:[%s5 + $0x10] sm:$0xff]
  %v879 = vld [vmem:[%s5 + $0x18] sm:$0xff]
  %v880 = vld [vmem:[%s5 + $0x20] sm:$0xff]
  %v881 = vld [vmem:[%s5 + $0x28] sm:$0xff]
  %v882 = vld [vmem:[%s5 + $0x30] sm:$0xff]
  %v883 = vld [vmem:[%s5 + $0x38] sm:$0xff]
  %v884 = vld [vmem:[%s6] sm:$0x3]
  %v886 = vlaneseq
  %v887 = vshrl.u32 %v886, 7
  %v888 = vsub.s32 0, %v887
  %v889 = vrot.slane %v884, %v888
  %v890 = vlaneseq
  %v891 = vshrl.u32 %v890, 7
  %v892 = vsub.s32 1, %v891
  %v893 = vrot.slane %v884, %v892
  %v904 = vunpack.c.l.b16 %v876
  %v905 = vunpack.c.h.b16 %v876
  %v906 = vunpack.c.l.b16 %v877
  %v907 = vunpack.c.h.b16 %v877
  %v908 = vunpack.c.l.b16 %v878
  %v909 = vunpack.c.h.b16 %v878
  %v910 = vunpack.c.l.b16 %v879
  %v911 = vunpack.c.h.b16 %v879
  %v912 = vunpack.c.l.b16 %v880
  %v913 = vunpack.c.h.b16 %v880
  %v914 = vunpack.c.l.b16 %v881
  %v915 = vunpack.c.h.b16 %v881
  %v916 = vunpack.c.l.b16 %v882
  %v917 = vunpack.c.h.b16 %v882
  %v918 = vunpack.c.l.b16 %v883
  %v919 = vunpack.c.h.b16 %v883
  %v920 = vpack.c.b16 %v906, %v904
  %v921 = vpack.c.b16 %v907, %v905
  %v922 = vpack.c.b16 %v910, %v908
  %v923 = vpack.c.b16 %v911, %v909
  %v924 = vpack.c.b16 %v914, %v912
  %v925 = vpack.c.b16 %v915, %v913
  %v926 = vpack.c.b16 %v918, %v916
  %v927 = vpack.c.b16 %v919, %v917
  %v937 = vsel %vm174, %v872, 0
  %v940 = vsel %vm174, %v873, 0
  %v943 = vsel %vm174, %v874, 0
  %v946 = vsel %vm174, %v875, 0
  %948 = vmatprep.subr.bf16.mxu0 0
  %949 = vmatpush1.bf16.msra.mxu0 0
  %950 = vmatprep.subr.bf16.mxu0 0
  %951 = vmatpush1.bf16.msra.mxu0 0
  %952 = vmatprep.subr.bf16.mxu0 0
  %953 = vmatpush1.bf16.msra.mxu0 0
  %954 = vmatprep.subr.bf16.mxu0 0
  %955 = vmatpush1.bf16.msra.mxu0 0
  %956 = vmatprep.subr.bf16.mxu0 %v927
  %957 = vmatpush1.bf16.msra.mxu0 %v926
  %958 = vmatprep.subr.bf16.mxu0 %v925
  %959 = vmatpush1.bf16.msra.mxu0 %v924
  %960 = vmatprep.subr.bf16.mxu0 %v923
  %961 = vmatpush1.bf16.msra.mxu0 %v922
  %962 = vmatprep.subr.bf16.mxu0 %v921
  %963 = vmatpush1.bf16.msra.mxu0 %v920
  %964 = vmatprep.subr.bf16.mxu0 0
  %965 = vmatpush2.bf16.msra.mxu0 0
  %966 = vmatprep.subr.bf16.mxu0 0
  %967 = vmatpush2.bf16.msra.mxu0 0
  %968 = vmatprep.subr.bf16.mxu0 0
  %969 = vmatpush2.bf16.msra.mxu0 0
  %970 = vmatprep.subr.bf16.mxu0 0
  %971 = vmatpush2.bf16.msra.mxu0 0
  %972 = vmatprep.subr.bf16.mxu0 0
  %973 = vmatpush2.bf16.msra.mxu0 0
  %974 = vmatprep.subr.bf16.mxu0 0
  %975 = vmatpush2.bf16.msra.mxu0 0
  %976 = vmatprep.subr.bf16.mxu0 0
  %977 = vmatpush2.bf16.msra.mxu0 0
  %978 = vmatprep.subr.bf16.mxu0 0
  %979 = vmatpush2.bf16.msra.mxu0 0
  %980 = vmatprep.mubr.bf16.mxu0 0
  %981 = vmatmul.mubr.bf16.gmra.mxu0 %v937
  %v982 = vpop.f32.mrf.mxu0
  %v983 = vadd.f32 %v889, %v982
  %v984 = vpop.f32.mrf.mxu0
  %v985 = vadd.f32 %v893, %v984
  %v986 = vpop.f32.mrf.mxu0
  %v987 = vadd.f32 %v889, %v986
  %v988 = vpop.f32.mrf.mxu0
  %v989 = vadd.f32 %v893, %v988
  %990 = vmatprep.mubr.bf16.mxu0 0
  %991 = vmatmul.mubr.bf16.gmra.mxu0 %v940
  %v992 = vpop.f32.mrf.mxu0
  %v993 = vadd.f32 %v889, %v992
  %v994 = vpop.f32.mrf.mxu0
  %v995 = vadd.f32 %v893, %v994
  %v996 = vpop.f32.mrf.mxu0
  %v997 = vadd.f32 %v889, %v996
  %v998 = vpop.f32.mrf.mxu0
  %v999 = vadd.f32 %v893, %v998
  %1000 = vmatprep.mubr.bf16.mxu0 0
  %1001 = vmatmul.mubr.bf16.gmra.mxu0 %v943
  %v1002 = vpop.f32.mrf.mxu0
  %v1003 = vadd.f32 %v889, %v1002
  %v1004 = vpop.f32.mrf.mxu0
  %v1005 = vadd.f32 %v893, %v1004
  %v1006 = vpop.f32.mrf.mxu0
  %v1007 = vadd.f32 %v889, %v1006
  %v1008 = vpop.f32.mrf.mxu0
  %v1009 = vadd.f32 %v893, %v1008
  %1010 = vmatprep.mubr.bf16.mxu0 0
  %1011 = vmatmul.mubr.bf16.gmra.mxu0 %v946
  %v1012 = vpop.f32.mrf.mxu0
  %v1013 = vadd.f32 %v889, %v1012
  %v1014 = vpop.f32.mrf.mxu0
  %v1015 = vadd.f32 %v893, %v1014
  %v1016 = vpop.f32.mrf.mxu0
  %v1017 = vadd.f32 %v889, %v1016
  %v1018 = vpop.f32.mrf.mxu0
  %v1019 = vadd.f32 %v893, %v1018
  %1020 = vdwg.mxu0
  %1021 = vst [vmem:[#allocation2] sm:$0xff] %v983
  %1022 = vst.msk [vmem:[#allocation2 + $0x8] sm:$0xff] %vm174, %v985
  %1023 = vst [vmem:[#allocation2 + $0x10] sm:$0xff] %v987
  %1024 = vst.msk [vmem:[#allocation2 + $0x18] sm:$0xff] %vm174, %v989
  %1025 = vst [vmem:[#allocation2 + $0x20] sm:$0xff] %v993
  %1026 = vst.msk [vmem:[#allocation2 + $0x28] sm:$0xff] %vm174, %v995
  %1027 = vst [vmem:[#allocation2 + $0x30] sm:$0xff] %v997
  %1028 = vst.msk [vmem:[#allocation2 + $0x38] sm:$0xff] %vm174, %v999
  %1029 = vst [vmem:[#allocation2 + $0x40] sm:$0xff] %v1003
  %1030 = vst.msk [vmem:[#allocation2 + $0x48] sm:$0xff] %vm174, %v1005
  %1031 = vst [vmem:[#allocation2 + $0x50] sm:$0xff] %v1007
  %1032 = vst.msk [vmem:[#allocation2 + $0x58] sm:$0xff] %vm174, %v1009
  %1033 = vst [vmem:[#allocation2 + $0x60] sm:$0xff] %v1013
  %1034 = vst.msk [vmem:[#allocation2 + $0x68] sm:$0xff] %vm174, %v1015
  %1035 = vst [vmem:[#allocation2 + $0x70] sm:$0xff] %v1017
  %1036 = vst.msk [vmem:[#allocation2 + $0x78] sm:$0xff] %vm174, %v1019
  %v1037 = vld [vmem:[%s7] sm:$0xff]
  %v1038 = vld [vmem:[%s7 + $0x8] sm:$0xff]
  %v1039 = vld [vmem:[%s7 + $0x10] sm:$0xff]
  %v1040 = vld [vmem:[%s7 + $0x18] sm:$0xff]
  %v1041 = vld [vmem:[%s7 + $0x20] sm:$0xff]
  %v1042 = vld [vmem:[%s7 + $0x28] sm:$0xff]
  %v1043 = vld [vmem:[%s7 + $0x30] sm:$0xff]
  %v1044 = vld [vmem:[%s7 + $0x38] sm:$0xff]
  %v1045 = vld [vmem:[%s8] sm:$0x1]
  %v1047 = vlaneseq
  %v1048 = vshrl.u32 %v1047, 7
  %v1049 = vsub.s32 0, %v1048
  %v1050 = vrot.slane %v1045, %v1049
  %v1052 = vld [vmem:[%s207] sm:$0xff]
  %v1053 = vld [vmem:[%s207 + $0x8] sm:$0xff]
  %v1062 = vunpack.c.l.b16 %v1037
  %v1063 = vunpack.c.h.b16 %v1037
  %v1064 = vunpack.c.l.b16 %v1038
  %v1065 = vunpack.c.h.b16 %v1038
  %v1066 = vunpack.c.l.b16 %v1039
  %v1067 = vunpack.c.h.b16 %v1039
  %v1068 = vunpack.c.l.b16 %v1040
  %v1069 = vunpack.c.h.b16 %v1040
  %v1070 = vunpack.c.l.b16 %v1041
  %v1071 = vunpack.c.h.b16 %v1041
  %v1072 = vunpack.c.l.b16 %v1042
  %v1073 = vunpack.c.h.b16 %v1042
  %v1074 = vunpack.c.l.b16 %v1043
  %v1075 = vunpack.c.h.b16 %v1043
  %v1076 = vunpack.c.l.b16 %v1044
  %v1077 = vunpack.c.h.b16 %v1044
  %v1078 = vpack.c.b16 %v1064, %v1062
  %v1079 = vpack.c.b16 %v1065, %v1063
  %v1080 = vpack.c.b16 %v1068, %v1066
  %v1081 = vpack.c.b16 %v1069, %v1067
  %v1082 = vpack.c.b16 %v1072, %v1070
  %v1083 = vpack.c.b16 %v1073, %v1071
  %v1084 = vpack.c.b16 %v1076, %v1074
  %v1085 = vpack.c.b16 %v1077, %v1075
  %1094 = vmatprep.subr.bf16.mxu0 0
  %1095 = vmatpush1.bf16.msra.mxu0 0
  %1096 = vmatprep.subr.bf16.mxu0 0
  %1097 = vmatpush1.bf16.msra.mxu0 0
  %1098 = vmatprep.subr.bf16.mxu0 0
  %1099 = vmatpush1.bf16.msra.mxu0 0
  %1100 = vmatprep.subr.bf16.mxu0 0
  %1101 = vmatpush1.bf16.msra.mxu0 0
  %1102 = vmatprep.subr.bf16.mxu0 %v1085
  %1103 = vmatpush1.bf16.msra.mxu0 %v1084
  %1104 = vmatprep.subr.bf16.mxu0 %v1083
  %1105 = vmatpush1.bf16.msra.mxu0 %v1082
  %1106 = vmatprep.subr.bf16.mxu0 %v1081
  %1107 = vmatpush1.bf16.msra.mxu0 %v1080
  %1108 = vmatprep.subr.bf16.mxu0 %v1079
  %1109 = vmatpush1.bf16.msra.mxu0 %v1078
  %1110 = vmatprep.subr.bf16.mxu0 0
  %1111 = vmatpush2.bf16.msra.mxu0 0
  %1112 = vmatprep.subr.bf16.mxu0 0
  %1113 = vmatpush2.bf16.msra.mxu0 0
  %1114 = vmatprep.subr.bf16.mxu0 0
  %1115 = vmatpush2.bf16.msra.mxu0 0
  %1116 = vmatprep.subr.bf16.mxu0 0
  %1117 = vmatpush2.bf16.msra.mxu0 0
  %1118 = vmatprep.subr.bf16.mxu0 0
  %1119 = vmatpush2.bf16.msra.mxu0 0
  %1120 = vmatprep.subr.bf16.mxu0 0
  %1121 = vmatpush2.bf16.msra.mxu0 0
  %1122 = vmatprep.subr.bf16.mxu0 0
  %1123 = vmatpush2.bf16.msra.mxu0 0
  %1124 = vmatprep.subr.bf16.mxu0 0
  %1125 = vmatpush2.bf16.msra.mxu0 0
  %1126 = vmatprep.mubr.bf16.mxu0 0
  %1127 = vmatmul.mubr.bf16.gmra.mxu0 %v251
  %v1128 = vpop.f32.mrf.mxu0
  %v1129 = vadd.f32 0.0, %v1128
  %v1130 = vpop.f32.mrf.mxu0
  %v1131 = vadd.f32 0.0, %v1130
  %v1132 = vpop.f32.mrf.mxu0
  %v1133 = vpop.f32.mrf.mxu0
  %1134 = vdwg.mxu0
  %v1135 = vadd.f32 %v1052, %v1129
  %v1136 = vxor.u32 %v1135, 2147483648
  %v1137 = vmul.f32 %v1136, 1.442695
  %v1138 = vpow.pop %v1137
  %v1139 = vadd.f32 %v1138, 1.0
  %v1140 = vrcp.pop %v1139
  %v1141 = vmul.f32 1.0, %v1140
  %v1142 = vadd.f32 %v1131, %v1050
  %v1143 = vmul.f32 %v1141, %v1142
  %v1144 = vadd.f32 %v1053, %v1143
  %v1145 = vtanh.pop %v1144
  %v1146 = vsub.f32 1.0, %v1141
  %1148 = vrot.lane.b32.xlu0 %v1145, 64
  %v1149 = vpop.permute.xlu0 %1148
  %v1151 = vmul.f32 %v1146, %v1149
  %v1152 = vmul.f32 %v1141, 0.0
  %v1153 = vadd.f32 %v1151, %v1152
  %1155 = vrot.lane.b32.xlu0 %v1153, 64
  %v1156 = vpop.permute.xlu0 %1155
  %1158 = vst.msk [vmem:[%s10] sm:$0xff] %vm174, %v1156
  %v1159 = vld [vmem:[%s320] sm:$0xff]
  %v1160 = vld [vmem:[%s320 + $0x8] sm:$0xff]
  %v1161 = vpack.c.bf16 %v1153, %v1153
  %1163 = vrot.lane.b32.xlu0 %v1161, 64
  %v1164 = vpop.permute.xlu0 %1163
  %v1166 = vsel %vm174, %v1164, 0
  %1168 = vmatprep.subr.bf16.mxu0 0
  %1169 = vmatpush1.bf16.msra.mxu0 0
  %1170 = vmatprep.subr.bf16.mxu0 0
  %1171 = vmatpush1.bf16.msra.mxu0 0
  %1172 = vmatprep.subr.bf16.mxu0 0
  %1173 = vmatpush1.bf16.msra.mxu0 0
  %1174 = vmatprep.subr.bf16.mxu0 0
  %1175 = vmatpush1.bf16.msra.mxu0 0
  %1176 = vmatprep.subr.bf16.mxu0 %v1085
  %1177 = vmatpush1.bf16.msra.mxu0 %v1084
  %1178 = vmatprep.subr.bf16.mxu0 %v1083
  %1179 = vmatpush1.bf16.msra.mxu0 %v1082
  %1180 = vmatprep.subr.bf16.mxu0 %v1081
  %1181 = vmatpush1.bf16.msra.mxu0 %v1080
  %1182 = vmatprep.subr.bf16.mxu0 %v1079
  %1183 = vmatpush1.bf16.msra.mxu0 %v1078
  %1184 = vmatprep.subr.bf16.mxu0 0
  %1185 = vmatpush2.bf16.msra.mxu0 0
  %1186 = vmatprep.subr.bf16.mxu0 0
  %1187 = vmatpush2.bf16.msra.mxu0 0
  %1188 = vmatprep.subr.bf16.mxu0 0
  %1189 = vmatpush2.bf16.msra.mxu0 0
  %1190 = vmatprep.subr.bf16.mxu0 0
  %1191 = vmatpush2.bf16.msra.mxu0 0
  %1192 = vmatprep.subr.bf16.mxu0 0
  %1193 = vmatpush2.bf16.msra.mxu0 0
  %1194 = vmatprep.subr.bf16.mxu0 0
  %1195 = vmatpush2.bf16.msra.mxu0 0
  %1196 = vmatprep.subr.bf16.mxu0 0
  %1197 = vmatpush2.bf16.msra.mxu0 0
  %1198 = vmatprep.subr.bf16.mxu0 0
  %1199 = vmatpush2.bf16.msra.mxu0 0
  %1200 = vmatprep.mubr.bf16.mxu0 0
  %1201 = vmatmul.mubr.bf16.gmra.mxu0 %v1166
  %v1202 = vpop.f32.mrf.mxu0
  %v1203 = vadd.f32 0.0, %v1202
  %v1204 = vpop.f32.mrf.mxu0
  %v1205 = vadd.f32 0.0, %v1204
  %v1206 = vpop.f32.mrf.mxu0
  %v1207 = vpop.f32.mrf.mxu0
  %1208 = vdwg.mxu0
  %v1209 = vadd.f32 %v1159, %v1203
  %v1210 = vxor.u32 %v1209, 2147483648
  %v1211 = vmul.f32 %v1210, 1.442695
  %v1212 = vpow.pop %v1211
  %v1213 = vadd.f32 %v1212, 1.0
  %v1214 = vrcp.pop %v1213
  %v1215 = vmul.f32 1.0, %v1214
  %v1216 = vadd.f32 %v1205, %v1050
  %v1217 = vmul.f32 %v1215, %v1216
  %v1218 = vadd.f32 %v1160, %v1217
  %v1219 = vtanh.pop %v1218
  %v1220 = vsub.f32 1.0, %v1215
  %1222 = vrot.lane.b32.xlu0 %v1219, 64
  %v1223 = vpop.permute.xlu0 %1222
  %v1225 = vmul.f32 %v1220, %v1223
  %v1226 = vmul.f32 %v1215, %v1153
  %v1227 = vadd.f32 %v1225, %v1226
  %1229 = vrot.lane.b32.xlu0 %v1227, 64
  %v1230 = vpop.permute.xlu0 %1229
  %s1232 = scalar_lea.vmem %s10, 8
  %1233 = vst.msk [vmem:[%s1232] sm:$0xff] %vm174, %v1230
  %v1234 = vld [vmem:[%s398] sm:$0xff]
  %v1235 = vld [vmem:[%s398 + $0x8] sm:$0xff]
  %v1236 = vpack.c.bf16 %v1227, %v1227
  %1238 = vrot.lane.b32.xlu0 %v1236, 64
  %v1239 = vpop.permute.xlu0 %1238
  %v1241 = vsel %vm174, %v1239, 0
  %1243 = vmatprep.subr.bf16.mxu0 0
  %1244 = vmatpush1.bf16.msra.mxu0 0
  %1245 = vmatprep.subr.bf16.mxu0 0
  %1246 = vmatpush1.bf16.msra.mxu0 0
  %1247 = vmatprep.subr.bf16.mxu0 0
  %1248 = vmatpush1.bf16.msra.mxu0 0
  %1249 = vmatprep.subr.bf16.mxu0 0
  %1250 = vmatpush1.bf16.msra.mxu0 0
  %1251 = vmatprep.subr.bf16.mxu0 %v1085
  %1252 = vmatpush1.bf16.msra.mxu0 %v1084
  %1253 = vmatprep.subr.bf16.mxu0 %v1083
  %1254 = vmatpush1.bf16.msra.mxu0 %v1082
  %1255 = vmatprep.subr.bf16.mxu0 %v1081
  %1256 = vmatpush1.bf16.msra.mxu0 %v1080
  %1257 = vmatprep.subr.bf16.mxu0 %v1079
  %1258 = vmatpush1.bf16.msra.mxu0 %v1078
  %1259 = vmatprep.subr.bf16.mxu0 0
  %1260 = vmatpush2.bf16.msra.mxu0 0
  %1261 = vmatprep.subr.bf16.mxu0 0
  %1262 = vmatpush2.bf16.msra.mxu0 0
  %1263 = vmatprep.subr.bf16.mxu0 0
  %1264 = vmatpush2.bf16.msra.mxu0 0
  %1265 = vmatprep.subr.bf16.mxu0 0
  %1266 = vmatpush2.bf16.msra.mxu0 0
  %1267 = vmatprep.subr.bf16.mxu0 0
  %1268 = vmatpush2.bf16.msra.mxu0 0
  %1269 = vmatprep.subr.bf16.mxu0 0
  %1270 = vmatpush2.bf16.msra.mxu0 0
  %1271 = vmatprep.subr.bf16.mxu0 0
  %1272 = vmatpush2.bf16.msra.mxu0 0
  %1273 = vmatprep.subr.bf16.mxu0 0
  %1274 = vmatpush2.bf16.msra.mxu0 0
  %1275 = vmatprep.mubr.bf16.mxu0 0
  %1276 = vmatmul.mubr.bf16.gmra.mxu0 %v1241
  %v1277 = vpop.f32.mrf.mxu0
  %v1278 = vadd.f32 0.0, %v1277
  %v1279 = vpop.f32.mrf.mxu0
  %v1280 = vadd.f32 0.0, %v1279
  %v1281 = vpop.f32.mrf.mxu0
  %v1282 = vpop.f32.mrf.mxu0
  %1283 = vdwg.mxu0
  %v1284 = vadd.f32 %v1234, %v1278
  %v1285 = vxor.u32 %v1284, 2147483648
  %v1286 = vmul.f32 %v1285, 1.442695
  %v1287 = vpow.pop %v1286
  %v1288 = vadd.f32 %v1287, 1.0
  %v1289 = vrcp.pop %v1288
  %v1290 = vmul.f32 1.0, %v1289
  %v1291 = vadd.f32 %v1280, %v1050
  %v1292 = vmul.f32 %v1290, %v1291
  %v1293 = vadd.f32 %v1235, %v1292
  %v1294 = vtanh.pop %v1293
  %v1295 = vsub.f32 1.0, %v1290
  %1297 = vrot.lane.b32.xlu0 %v1294, 64
  %v1298 = vpop.permute.xlu0 %1297
  %v1300 = vmul.f32 %v1295, %v1298
  %v1301 = vmul.f32 %v1290, %v1227
  %v1302 = vadd.f32 %v1300, %v1301
  %1304 = vrot.lane.b32.xlu0 %v1302, 64
  %v1305 = vpop.permute.xlu0 %1304
  %s1307 = scalar_lea.vmem %s10, 16
  %1308 = vst.msk [vmem:[%s1307] sm:$0xff] %vm174, %v1305
  %v1309 = vld [vmem:[%s476] sm:$0xff]
  %v1310 = vld [vmem:[%s476 + $0x8] sm:$0xff]
  %v1311 = vpack.c.bf16 %v1302, %v1302
  %1313 = vrot.lane.b32.xlu0 %v1311, 64
  %v1314 = vpop.permute.xlu0 %1313
  %v1316 = vsel %vm174, %v1314, 0
  %1318 = vmatprep.subr.bf16.mxu0 0
  %1319 = vmatpush1.bf16.msra.mxu0 0
  %1320 = vmatprep.subr.bf16.mxu0 0
  %1321 = vmatpush1.bf16.msra.mxu0 0
  %1322 = vmatprep.subr.bf16.mxu0 0
  %1323 = vmatpush1.bf16.msra.mxu0 0
  %1324 = vmatprep.subr.bf16.mxu0 0
  %1325 = vmatpush1.bf16.msra.mxu0 0
  %1326 = vmatprep.subr.bf16.mxu0 %v1085
  %1327 = vmatpush1.bf16.msra.mxu0 %v1084
  %1328 = vmatprep.subr.bf16.mxu0 %v1083
  %1329 = vmatpush1.bf16.msra.mxu0 %v1082
  %1330 = vmatprep.subr.bf16.mxu0 %v1081
  %1331 = vmatpush1.bf16.msra.mxu0 %v1080
  %1332 = vmatprep.subr.bf16.mxu0 %v1079
  %1333 = vmatpush1.bf16.msra.mxu0 %v1078
  %1334 = vmatprep.subr.bf16.mxu0 0
  %1335 = vmatpush2.bf16.msra.mxu0 0
  %1336 = vmatprep.subr.bf16.mxu0 0
  %1337 = vmatpush2.bf16.msra.mxu0 0
  %1338 = vmatprep.subr.bf16.mxu0 0
  %1339 = vmatpush2.bf16.msra.mxu0 0
  %1340 = vmatprep.subr.bf16.mxu0 0
  %1341 = vmatpush2.bf16.msra.mxu0 0
  %1342 = vmatprep.subr.bf16.mxu0 0
  %1343 = vmatpush2.bf16.msra.mxu0 0
  %1344 = vmatprep.subr.bf16.mxu0 0
  %1345 = vmatpush2.bf16.msra.mxu0 0
  %1346 = vmatprep.subr.bf16.mxu0 0
  %1347 = vmatpush2.bf16.msra.mxu0 0
  %1348 = vmatprep.subr.bf16.mxu0 0
  %1349 = vmatpush2.bf16.msra.mxu0 0
  %1350 = vmatprep.mubr.bf16.mxu0 0
  %1351 = vmatmul.mubr.bf16.gmra.mxu0 %v1316
  %v1352 = vpop.f32.mrf.mxu0
  %v1353 = vadd.f32 0.0, %v1352
  %v1354 = vpop.f32.mrf.mxu0
  %v1355 = vadd.f32 0.0, %v1354
  %v1356 = vpop.f32.mrf.mxu0
  %v1357 = vpop.f32.mrf.mxu0
  %1358 = vdwg.mxu0
  %v1359 = vadd.f32 %v1309, %v1353
  %v1360 = vxor.u32 %v1359, 2147483648
  %v1361 = vmul.f32 %v1360, 1.442695
  %v1362 = vpow.pop %v1361
  %v1363 = vadd.f32 %v1362, 1.0
  %v1364 = vrcp.pop %v1363
  %v1365 = vmul.f32 1.0, %v1364
  %v1366 = vadd.f32 %v1355, %v1050
  %v1367 = vmul.f32 %v1365, %v1366
  %v1368 = vadd.f32 %v1310, %v1367
  %v1369 = vtanh.pop %v1368
  %v1370 = vsub.f32 1.0, %v1365
  %1372 = vrot.lane.b32.xlu0 %v1369, 64
  %v1373 = vpop.permute.xlu0 %1372
  %v1375 = vmul.f32 %v1370, %v1373
  %v1376 = vmul.f32 %v1365, %v1302
  %v1377 = vadd.f32 %v1375, %v1376
  %1379 = vrot.lane.b32.xlu0 %v1377, 64
  %v1380 = vpop.permute.xlu0 %1379
  %s1382 = scalar_lea.vmem %s10, 24
  %1383 = vst.msk [vmem:[%s1382] sm:$0xff] %vm174, %v1380
  %v1384 = vld [vmem:[%s554] sm:$0xff]
  %v1385 = vld [vmem:[%s554 + $0x8] sm:$0xff]
  %v1386 = vpack.c.bf16 %v1377, %v1377
  %1388 = vrot.lane.b32.xlu0 %v1386, 64
  %v1389 = vpop.permute.xlu0 %1388
  %v1391 = vsel %vm174, %v1389, 0
  %1393 = vmatprep.subr.bf16.mxu0 0
  %1394 = vmatpush1.bf16.msra.mxu0 0
  %1395 = vmatprep.subr.bf16.mxu0 0
  %1396 = vmatpush1.bf16.msra.mxu0 0
  %1397 = vmatprep.subr.bf16.mxu0 0
  %1398 = vmatpush1.bf16.msra.mxu0 0
  %1399 = vmatprep.subr.bf16.mxu0 0
  %1400 = vmatpush1.bf16.msra.mxu0 0
  %1401 = vmatprep.subr.bf16.mxu0 %v1085
  %1402 = vmatpush1.bf16.msra.mxu0 %v1084
  %1403 = vmatprep.subr.bf16.mxu0 %v1083
  %1404 = vmatpush1.bf16.msra.mxu0 %v1082
  %1405 = vmatprep.subr.bf16.mxu0 %v1081
  %1406 = vmatpush1.bf16.msra.mxu0 %v1080
  %1407 = vmatprep.subr.bf16.mxu0 %v1079
  %1408 = vmatpush1.bf16.msra.mxu0 %v1078
  %1409 = vmatprep.subr.bf16.mxu0 0
  %1410 = vmatpush2.bf16.msra.mxu0 0
  %1411 = vmatprep.subr.bf16.mxu0 0
  %1412 = vmatpush2.bf16.msra.mxu0 0
  %1413 = vmatprep.subr.bf16.mxu0 0
  %1414 = vmatpush2.bf16.msra.mxu0 0
  %1415 = vmatprep.subr.bf16.mxu0 0
  %1416 = vmatpush2.bf16.msra.mxu0 0
  %1417 = vmatprep.subr.bf16.mxu0 0
  %1418 = vmatpush2.bf16.msra.mxu0 0
  %1419 = vmatprep.subr.bf16.mxu0 0
  %1420 = vmatpush2.bf16.msra.mxu0 0
  %1421 = vmatprep.subr.bf16.mxu0 0
  %1422 = vmatpush2.bf16.msra.mxu0 0
  %1423 = vmatprep.subr.bf16.mxu0 0
  %1424 = vmatpush2.bf16.msra.mxu0 0
  %1425 = vmatprep.mubr.bf16.mxu0 0
  %1426 = vmatmul.mubr.bf16.gmra.mxu0 %v1391
  %v1427 = vpop.f32.mrf.mxu0
  %v1428 = vadd.f32 0.0, %v1427
  %v1429 = vpop.f32.mrf.mxu0
  %v1430 = vadd.f32 0.0, %v1429
  %v1431 = vpop.f32.mrf.mxu0
  %v1432 = vpop.f32.mrf.mxu0
  %1433 = vdwg.mxu0
  %v1434 = vadd.f32 %v1384, %v1428
  %v1435 = vxor.u32 %v1434, 2147483648
  %v1436 = vmul.f32 %v1435, 1.442695
  %v1437 = vpow.pop %v1436
  %v1438 = vadd.f32 %v1437, 1.0
  %v1439 = vrcp.pop %v1438
  %v1440 = vmul.f32 1.0, %v1439
  %v1441 = vadd.f32 %v1430, %v1050
  %v1442 = vmul.f32 %v1440, %v1441
  %v1443 = vadd.f32 %v1385, %v1442
  %v1444 = vtanh.pop %v1443
  %v1445 = vsub.f32 1.0, %v1440
  %1447 = vrot.lane.b32.xlu0 %v1444, 64
  %v1448 = vpop.permute.xlu0 %1447
  %v1450 = vmul.f32 %v1445, %v1448
  %v1451 = vmul.f32 %v1440, %v1377
  %v1452 = vadd.f32 %v1450, %v1451
  %1454 = vrot.lane.b32.xlu0 %v1452, 64
  %v1455 = vpop.permute.xlu0 %1454
  %s1457 = scalar_lea.vmem %s10, 32
  %1458 = vst.msk [vmem:[%s1457] sm:$0xff] %vm174, %v1455
  %v1459 = vld [vmem:[%s632] sm:$0xff]
  %v1460 = vld [vmem:[%s632 + $0x8] sm:$0xff]
  %v1461 = vpack.c.bf16 %v1452, %v1452
  %1463 = vrot.lane.b32.xlu0 %v1461, 64
  %v1464 = vpop.permute.xlu0 %1463
  %v1466 = vsel %vm174, %v1464, 0
  %1468 = vmatprep.subr.bf16.mxu0 0
  %1469 = vmatpush1.bf16.msra.mxu0 0
  %1470 = vmatprep.subr.bf16.mxu0 0
  %1471 = vmatpush1.bf16.msra.mxu0 0
  %1472 = vmatprep.subr.bf16.mxu0 0
  %1473 = vmatpush1.bf16.msra.mxu0 0
  %1474 = vmatprep.subr.bf16.mxu0 0
  %1475 = vmatpush1.bf16.msra.mxu0 0
  %1476 = vmatprep.subr.bf16.mxu0 %v1085
  %1477 = vmatpush1.bf16.msra.mxu0 %v1084
  %1478 = vmatprep.subr.bf16.mxu0 %v1083
  %1479 = vmatpush1.bf16.msra.mxu0 %v1082
  %1480 = vmatprep.subr.bf16.mxu0 %v1081
  %1481 = vmatpush1.bf16.msra.mxu0 %v1080
  %1482 = vmatprep.subr.bf16.mxu0 %v1079
  %1483 = vmatpush1.bf16.msra.mxu0 %v1078
  %1484 = vmatprep.subr.bf16.mxu0 0
  %1485 = vmatpush2.bf16.msra.mxu0 0
  %1486 = vmatprep.subr.bf16.mxu0 0
  %1487 = vmatpush2.bf16.msra.mxu0 0
  %1488 = vmatprep.subr.bf16.mxu0 0
  %1489 = vmatpush2.bf16.msra.mxu0 0
  %1490 = vmatprep.subr.bf16.mxu0 0
  %1491 = vmatpush2.bf16.msra.mxu0 0
  %1492 = vmatprep.subr.bf16.mxu0 0
  %1493 = vmatpush2.bf16.msra.mxu0 0
  %1494 = vmatprep.subr.bf16.mxu0 0
  %1495 = vmatpush2.bf16.msra.mxu0 0
  %1496 = vmatprep.subr.bf16.mxu0 0
  %1497 = vmatpush2.bf16.msra.mxu0 0
  %1498 = vmatprep.subr.bf16.mxu0 0
  %1499 = vmatpush2.bf16.msra.mxu0 0
  %1500 = vmatprep.mubr.bf16.mxu0 0
  %1501 = vmatmul.mubr.bf16.gmra.mxu0 %v1466
  %v1502 = vpop.f32.mrf.mxu0
  %v1503 = vadd.f32 0.0, %v1502
  %v1504 = vpop.f32.mrf.mxu0
  %v1505 = vadd.f32 0.0, %v1504
  %v1506 = vpop.f32.mrf.mxu0
  %v1507 = vpop.f32.mrf.mxu0
  %1508 = vdwg.mxu0
  %v1509 = vadd.f32 %v1459, %v1503
  %v1510 = vxor.u32 %v1509, 2147483648
  %v1511 = vmul.f32 %v1510, 1.442695
  %v1512 = vpow.pop %v1511
  %v1513 = vadd.f32 %v1512, 1.0
  %v1514 = vrcp.pop %v1513
  %v1515 = vmul.f32 1.0, %v1514
  %v1516 = vadd.f32 %v1505, %v1050
  %v1517 = vmul.f32 %v1515, %v1516
  %v1518 = vadd.f32 %v1460, %v1517
  %v1519 = vtanh.pop %v1518
  %v1520 = vsub.f32 1.0, %v1515
  %1522 = vrot.lane.b32.xlu0 %v1519, 64
  %v1523 = vpop.permute.xlu0 %1522
  %v1525 = vmul.f32 %v1520, %v1523
  %v1526 = vmul.f32 %v1515, %v1452
  %v1527 = vadd.f32 %v1525, %v1526
  %1529 = vrot.lane.b32.xlu0 %v1527, 64
  %v1530 = vpop.permute.xlu0 %1529
  %s1532 = scalar_lea.vmem %s10, 40
  %1533 = vst.msk [vmem:[%s1532] sm:$0xff] %vm174, %v1530
  %v1534 = vld [vmem:[%s710] sm:$0xff]
  %v1535 = vld [vmem:[%s710 + $0x8] sm:$0xff]
  %v1536 = vpack.c.bf16 %v1527, %v1527
  %1538 = vrot.lane.b32.xlu0 %v1536, 64
  %v1539 = vpop.permute.xlu0 %1538
  %v1541 = vsel %vm174, %v1539, 0
  %1543 = vmatprep.subr.bf16.mxu0 0
  %1544 = vmatpush1.bf16.msra.mxu0 0
  %1545 = vmatprep.subr.bf16.mxu0 0
  %1546 = vmatpush1.bf16.msra.mxu0 0
  %1547 = vmatprep.subr.bf16.mxu0 0
  %1548 = vmatpush1.bf16.msra.mxu0 0
  %1549 = vmatprep.subr.bf16.mxu0 0
  %1550 = vmatpush1.bf16.msra.mxu0 0
  %1551 = vmatprep.subr.bf16.mxu0 %v1085
  %1552 = vmatpush1.bf16.msra.mxu0 %v1084
  %1553 = vmatprep.subr.bf16.mxu0 %v1083
  %1554 = vmatpush1.bf16.msra.mxu0 %v1082
  %1555 = vmatprep.subr.bf16.mxu0 %v1081
  %1556 = vmatpush1.bf16.msra.mxu0 %v1080
  %1557 = vmatprep.subr.bf16.mxu0 %v1079
  %1558 = vmatpush1.bf16.msra.mxu0 %v1078
  %1559 = vmatprep.subr.bf16.mxu0 0
  %1560 = vmatpush2.bf16.msra.mxu0 0
  %1561 = vmatprep.subr.bf16.mxu0 0
  %1562 = vmatpush2.bf16.msra.mxu0 0
  %1563 = vmatprep.subr.bf16.mxu0 0
  %1564 = vmatpush2.bf16.msra.mxu0 0
  %1565 = vmatprep.subr.bf16.mxu0 0
  %1566 = vmatpush2.bf16.msra.mxu0 0
  %1567 = vmatprep.subr.bf16.mxu0 0
  %1568 = vmatpush2.bf16.msra.mxu0 0
  %1569 = vmatprep.subr.bf16.mxu0 0
  %1570 = vmatpush2.bf16.msra.mxu0 0
  %1571 = vmatprep.subr.bf16.mxu0 0
  %1572 = vmatpush2.bf16.msra.mxu0 0
  %1573 = vmatprep.subr.bf16.mxu0 0
  %1574 = vmatpush2.bf16.msra.mxu0 0
  %1575 = vmatprep.mubr.bf16.mxu0 0
  %1576 = vmatmul.mubr.bf16.gmra.mxu0 %v1541
  %v1577 = vpop.f32.mrf.mxu0
  %v1578 = vadd.f32 0.0, %v1577
  %v1579 = vpop.f32.mrf.mxu0
  %v1580 = vadd.f32 0.0, %v1579
  %v1581 = vpop.f32.mrf.mxu0
  %v1582 = vpop.f32.mrf.mxu0
  %1583 = vdwg.mxu0
  %v1584 = vadd.f32 %v1534, %v1578
  %v1585 = vxor.u32 %v1584, 2147483648
  %v1586 = vmul.f32 %v1585, 1.442695
  %v1587 = vpow.pop %v1586
  %v1588 = vadd.f32 %v1587, 1.0
  %v1589 = vrcp.pop %v1588
  %v1590 = vmul.f32 1.0, %v1589
  %v1591 = vadd.f32 %v1580, %v1050
  %v1592 = vmul.f32 %v1590, %v1591
  %v1593 = vadd.f32 %v1535, %v1592
  %v1594 = vtanh.pop %v1593
  %v1595 = vsub.f32 1.0, %v1590
  %1597 = vrot.lane.b32.xlu0 %v1594, 64
  %v1598 = vpop.permute.xlu0 %1597
  %v1600 = vmul.f32 %v1595, %v1598
  %v1601 = vmul.f32 %v1590, %v1527
  %v1602 = vadd.f32 %v1600, %v1601
  %1604 = vrot.lane.b32.xlu0 %v1602, 64
  %v1605 = vpop.permute.xlu0 %1604
  %s1607 = scalar_lea.vmem %s10, 48
  %1608 = vst.msk [vmem:[%s1607] sm:$0xff] %vm174, %v1605
  %v1609 = vld [vmem:[%s788] sm:$0xff]
  %v1610 = vld [vmem:[%s788 + $0x8] sm:$0xff]
  %v1611 = vpack.c.bf16 %v1602, %v1602
  %1613 = vrot.lane.b32.xlu0 %v1611, 64
  %v1614 = vpop.permute.xlu0 %1613
  %v1616 = vsel %vm174, %v1614, 0
  %1618 = vmatprep.subr.bf16.mxu0 0
  %1619 = vmatpush1.bf16.msra.mxu0 0
  %1620 = vmatprep.subr.bf16.mxu0 0
  %1621 = vmatpush1.bf16.msra.mxu0 0
  %1622 = vmatprep.subr.bf16.mxu0 0
  %1623 = vmatpush1.bf16.msra.mxu0 0
  %1624 = vmatprep.subr.bf16.mxu0 0
  %1625 = vmatpush1.bf16.msra.mxu0 0
  %1626 = vmatprep.subr.bf16.mxu0 %v1085
  %1627 = vmatpush1.bf16.msra.mxu0 %v1084
  %1628 = vmatprep.subr.bf16.mxu0 %v1083
  %1629 = vmatpush1.bf16.msra.mxu0 %v1082
  %1630 = vmatprep.subr.bf16.mxu0 %v1081
  %1631 = vmatpush1.bf16.msra.mxu0 %v1080
  %1632 = vmatprep.subr.bf16.mxu0 %v1079
  %1633 = vmatpush1.bf16.msra.mxu0 %v1078
  %1634 = vmatprep.subr.bf16.mxu0 0
  %1635 = vmatpush2.bf16.msra.mxu0 0
  %1636 = vmatprep.subr.bf16.mxu0 0
  %1637 = vmatpush2.bf16.msra.mxu0 0
  %1638 = vmatprep.subr.bf16.mxu0 0
  %1639 = vmatpush2.bf16.msra.mxu0 0
  %1640 = vmatprep.subr.bf16.mxu0 0
  %1641 = vmatpush2.bf16.msra.mxu0 0
  %1642 = vmatprep.subr.bf16.mxu0 0
  %1643 = vmatpush2.bf16.msra.mxu0 0
  %1644 = vmatprep.subr.bf16.mxu0 0
  %1645 = vmatpush2.bf16.msra.mxu0 0
  %1646 = vmatprep.subr.bf16.mxu0 0
  %1647 = vmatpush2.bf16.msra.mxu0 0
  %1648 = vmatprep.subr.bf16.mxu0 0
  %1649 = vmatpush2.bf16.msra.mxu0 0
  %1650 = vmatprep.mubr.bf16.mxu0 0
  %1651 = vmatmul.mubr.bf16.gmra.mxu0 %v1616
  %v1652 = vpop.f32.mrf.mxu0
  %v1653 = vadd.f32 0.0, %v1652
  %v1654 = vpop.f32.mrf.mxu0
  %v1655 = vadd.f32 0.0, %v1654
  %v1656 = vpop.f32.mrf.mxu0
  %v1657 = vpop.f32.mrf.mxu0
  %1658 = vdwg.mxu0
  %v1659 = vadd.f32 %v1609, %v1653
  %v1660 = vxor.u32 %v1659, 2147483648
  %v1661 = vmul.f32 %v1660, 1.442695
  %v1662 = vpow.pop %v1661
  %v1663 = vadd.f32 %v1662, 1.0
  %v1664 = vrcp.pop %v1663
  %v1665 = vmul.f32 1.0, %v1664
  %v1666 = vadd.f32 %v1655, %v1050
  %v1667 = vmul.f32 %v1665, %v1666
  %v1668 = vadd.f32 %v1610, %v1667
  %v1669 = vtanh.pop %v1668
  %v1670 = vsub.f32 1.0, %v1665
  %1672 = vrot.lane.b32.xlu0 %v1669, 64
  %v1673 = vpop.permute.xlu0 %1672
  %v1675 = vmul.f32 %v1670, %v1673
  %v1676 = vmul.f32 %v1665, %v1602
  %v1677 = vadd.f32 %v1675, %v1676
  %1679 = vrot.lane.b32.xlu0 %v1677, 64
  %v1680 = vpop.permute.xlu0 %1679
  %s1682 = scalar_lea.vmem %s10, 56
  %1683 = vst.msk [vmem:[%s1682] sm:$0xff] %vm174, %v1680
  // Predicated region
  $region38: #{encoder_birnn_forward.1} parent=0 // pred_check
    _
  $region39: #{encoder_birnn_forward.1} parent=0 // pred_check_branch
    %1685 = sbr.rel (0) target = $region41
  $region40: #{encoder_birnn_forward.1} parent=0 // pred_region
    _
  $region41: #{encoder_birnn_forward.1} parent=0 // pred_fallthru
    _
  // Predicated region
  $region42: #{encoder_birnn_forward.1} parent=0 // pred_check
    _
  $region43: #{encoder_birnn_forward.1} parent=0 // pred_check_branch
    %1687 = sbr.rel (0) target = $region45
  $region44: #{encoder_birnn_forward.1} parent=0 // pred_region
    _
  $region45: #{encoder_birnn_forward.1} parent=0 // pred_fallthru
    _
  // Predicated region
  $region46: #{encoder_birnn_forward.1} parent=0 // pred_check
    _
  $region47: #{encoder_birnn_forward.1} parent=0 // pred_check_branch
    %1689 = sbr.rel (0) target = $region49
  $region48: #{encoder_birnn_forward.1} parent=0 // pred_region
    _
  $region49: #{encoder_birnn_forward.1} parent=0 // pred_fallthru
    _
  // Predicated region
  $region50: #{encoder_birnn_forward.1} parent=0 // pred_check
    _
  $region51: #{encoder_birnn_forward.1} parent=0 // pred_check_branch
    %1691 = sbr.rel (0) target = $region53
  $region52: #{encoder_birnn_forward.1} parent=0 // pred_region
    _
  $region53: #{encoder_birnn_forward.1} parent=0 // pred_fallthru
    _

</llo_original>
